<compile_context>
chip_gen: v6e
topology: v6e:2x2x1
jax: 0.10.0
libtpu: 0.0.40
codegen_flags: <defaults>
</compile_context>

<pallas_src>
import functools

import jax
import jax.numpy as jnp
from jax.experimental import pallas as pl
from jax.experimental.pallas import tpu as pltpu

THRESH = 0.5   # LIF firing threshold
DECAY = 0.2    # LIF membrane decay
BN_EPS = 1e-5


def _deep_layer_kernel(x_ref, apow_ref,
                       g1_ref, b1_ref, w1_ref, bias1_ref, cred1_ref, bc1_ref,
                       g2_ref, b2_ref, w2_ref, bias2_ref, cred2_ref, bc2_ref,
                       out_ref,
                       spk1_ref, spk2_ref, *, T, B):
    """Fused norm1->spike1->Conv1->norm2->spike2->Conv2 for the whole batch.

    Layouts (batch folded into lanes, (t, b, c) column order):
      x_ref    : (N, T*B*Cin)  f32
      apow_ref : (3N, N)       bf16   rows = [A_hat ; A_hat^2 ; A_hat^3]
      w1_ref   : (2*T*B*Cin,  T*B*Cmid) bf16  hop-stacked, block-diag over (t,b)
      w2_ref   : (4*T*B*Cmid, T*B*Cout) bf16
      g*/b*/bias* : (1, F) f32  gamma/beta/bias tiled to full column width
      cred*    : (F, C) f32  lane->channel reduce matrix (column c of group g)
      bc*      : (C, F) f32  channel->lane broadcast matrix (= cred.T)
      out_ref  : (N, T*B*Cout) f32
      spk*_ref : f32 VMEM scratch for the spike slabs
    """
    N = x_ref.shape[0]
    inv_cnt = 1.0 / float(B * N * T)   # BN statistics are over (B, N, T)

    def ebnorm_lif(h, gamma_full, beta_full, cred_ref, bcast_ref, spk_ref):
        """Training-mode BN (batch stats, centered two-pass var) + LIF over T."""
        C = cred_ref.shape[1]
        cred = cred_ref[...]
        bcast = bcast_ref[...]
        # per-channel mean over (rows = N) x (lane groups = T*B)
        mean = jnp.sum(jnp.dot(h, cred, preferred_element_type=jnp.float32),
                       axis=0, keepdims=True) * inv_cnt                    # (1, C)
        hc = h - jnp.dot(mean, bcast, preferred_element_type=jnp.float32)  # centered
        var = jnp.sum(jnp.dot(hc * hc, cred, preferred_element_type=jnp.float32),
                      axis=0, keepdims=True) * inv_cnt                     # (1, C)
        inv_full = jnp.dot(jax.lax.rsqrt(var + BN_EPS), bcast,
                           preferred_element_type=jnp.float32)             # (1, F)
        xn = hc * (gamma_full * inv_full) + beta_full                      # (N, F)

        # LIF recurrence: the only sequential part; VPU ops on B*C-lane slices,
        # spikes written straight into the VMEM scratch slab (no concatenate).
        W = B * C
        u = jnp.zeros((N, W), jnp.float32)
        o = jnp.zeros((N, W), jnp.float32)
        for t in range(T):                       # T is small & static -> unrolled
            xt = xn[:, t * W:(t + 1) * W]
            u = DECAY * u * (1.0 - o) + xt
            o = jnp.where(u > THRESH, 1.0, 0.0)  # H(u - thresh); fires on u > 0.5
            spk_ref[:, t * W:(t + 1) * W] = o
        # single full-slab cast; spikes are 0/1 -> exact in bf16
        return spk_ref[...].astype(jnp.bfloat16)

    # ---------------- stage 1: norm1 -> spike1 -> TAGConv(K=1) ----------------
    x = x_ref[...]                                                  # (N, F1) f32
    spk1 = ebnorm_lif(x, g1_ref[...], b1_ref[...], cred1_ref, bc1_ref, spk1_ref)
    F1 = spk1.shape[1]
    a1 = apow_ref[0:N, :]                                           # A_hat, bf16
    hop1 = jnp.dot(a1, spk1, preferred_element_type=jnp.float32).astype(jnp.bfloat16)
    y1 = jnp.dot(spk1, w1_ref[0:F1, :], preferred_element_type=jnp.float32)
    y1 = y1 + jnp.dot(hop1, w1_ref[F1:2 * F1, :], preferred_element_type=jnp.float32)
    y1 = y1 + bias1_ref[...]                                        # (N, F1out) f32

    # ---------------- stage 2: norm2 -> spike2 -> TAGConv(K=3) ----------------
    spk2 = ebnorm_lif(y1, g2_ref[...], b2_ref[...], cred2_ref, bc2_ref, spk2_ref)
    F2 = spk2.shape[1]
    # all hop features in ONE matmul against the stacked powers [A; A^2; A^3]
    hall = jnp.dot(apow_ref[...], spk2, preferred_element_type=jnp.float32)   # (3N, F2)
    hall = hall.astype(jnp.bfloat16)
    y2 = jnp.dot(spk2, w2_ref[0:F2, :], preferred_element_type=jnp.float32)
    for k in range(1, 4):
        y2 = y2 + jnp.dot(hall[(k - 1) * N:k * N, :],
                          w2_ref[k * F2:(k + 1) * F2, :],
                          preferred_element_type=jnp.float32)
    y2 = y2 + bias2_ref[...]
    out_ref[...] = y2


def normalized_adjacency(edge_index, num_nodes):
    """Dense symmetric-normalized adjacency D^{-1/2} A D^{-1/2} (no self loops)."""
    src, dst = edge_index[0], edge_index[1]
    a = jnp.zeros((num_nodes, num_nodes), jnp.float32).at[dst, src].add(1.0)
    deg = a.sum(axis=1)
    dinv = jnp.where(deg > 0, jax.lax.rsqrt(deg), 0.0)
    return dinv[:, None] * a * dinv[None, :]


def prepare_deep_layer(params, edge_index, num_nodes, batch, time_steps):
    """Hoisted per-call invariants: adjacency powers, stacked weights, BN tiles."""
    N, B, T = num_nodes, batch, time_steps
    G = T * B
    Cin = params["gamma1"].shape[0]
    Cmid = params["gamma2"].shape[0]
    Cout = params["W2"].shape[-1]

    a = normalized_adjacency(edge_index, N)                       # f32 (N, N)
    a2 = a @ a
    a3 = a2 @ a
    apow = jnp.concatenate([a, a2, a3], axis=0).astype(jnp.bfloat16)   # (3N, N)

    eye_g = jnp.eye(G, dtype=jnp.float32)
    # hop-stacked, block-diagonal-over-(t,b) TAGConv weights (bf16 MXU operands)
    w1 = jnp.concatenate([jnp.kron(eye_g, params["W1"][k].astype(jnp.float32))
                          for k in range(2)], axis=0).astype(jnp.bfloat16)
    w2 = jnp.concatenate([jnp.kron(eye_g, params["W2"][k].astype(jnp.float32))
                          for k in range(4)], axis=0).astype(jnp.bfloat16)

    def tile_row(v):                                              # (C,) -> (1, G*C)
        v = v.astype(jnp.float32)
        return jnp.tile(v, G).reshape(1, G * v.shape[0])

    consts = dict(
        apow=apow, w1=w1, w2=w2,
        g1=tile_row(params["gamma1"]), b1=tile_row(params["beta1"]),
        g2=tile_row(params["gamma2"]), b2=tile_row(params["beta2"]),
        bias1=tile_row(params["b1"]), bias2=tile_row(params["b2"]),
        cred1=jnp.tile(jnp.eye(Cin, dtype=jnp.float32), (G, 1)),   # (G*Cin, Cin)
        bc1=jnp.tile(jnp.eye(Cin, dtype=jnp.float32), (1, G)),     # (Cin, G*Cin)
        cred2=jnp.tile(jnp.eye(Cmid, dtype=jnp.float32), (G, 1)),
        bc2=jnp.tile(jnp.eye(Cmid, dtype=jnp.float32), (1, G)),
    )
    meta = (N, B, T, Cin, Cmid, Cout)
    return consts, meta


def deep_layer_forward(x_bnct, consts, *, meta, drop_rate=0.0):
    """x_bnct: (B, N, C_in, T) -> (B, N, C_in + growth_rate, T)."""
    N, B, T, Cin, Cmid, Cout = meta
    F1, F1o, F2o = T * B * Cin, T * B * Cmid, T * B * Cout

    # (B, N, C, T) -> (N, T*B*C): (t, b, c) column order, batch in lanes.
    x_slab = jnp.transpose(x_bnct, (1, 3, 0, 2)).reshape(N, F1).astype(jnp.float32)

    kernel = functools.partial(_deep_layer_kernel, T=T, B=B)
    full2d = lambda i: (0, 0)

    y = pl.pallas_call(
        kernel,
        out_shape=jax.ShapeDtypeStruct((N, F2o), jnp.float32),
        grid_spec=pltpu.PrefetchScalarGridSpec(
            num_scalar_prefetch=0,
            grid=(1,),                       # fully fused: one invocation per call
            in_specs=[
                pl.BlockSpec((N, F1), full2d),            # x slab
                pl.BlockSpec((3 * N, N), full2d),         # [A; A^2; A^3]
                pl.BlockSpec((1, F1), full2d),            # gamma1 (tiled)
                pl.BlockSpec((1, F1), full2d),            # beta1  (tiled)
                pl.BlockSpec((2 * F1, F1o), full2d),      # W1 (hop-stacked)
                pl.BlockSpec((1, F1o), full2d),           # bias1 (tiled)
                pl.BlockSpec((F1, Cin), full2d),          # cred1
                pl.BlockSpec((Cin, F1), full2d),          # bc1
                pl.BlockSpec((1, F1o), full2d),           # gamma2 (tiled)
                pl.BlockSpec((1, F1o), full2d),           # beta2  (tiled)
                pl.BlockSpec((4 * F1o, F2o), full2d),     # W2 (hop-stacked)
                pl.BlockSpec((1, F2o), full2d),           # bias2 (tiled)
                pl.BlockSpec((F1o, Cmid), full2d),        # cred2
                pl.BlockSpec((Cmid, F1o), full2d),        # bc2
            ],
            out_specs=pl.BlockSpec((N, F2o), full2d),
            scratch_shapes=[
                pltpu.VMEM((N, F1), jnp.float32),         # spike slab, stage 1
                pltpu.VMEM((N, F1o), jnp.float32),        # spike slab, stage 2
            ],
        ),
        compiler_params=pltpu.CompilerParams(
            dimension_semantics=("arbitrary",),
            vmem_limit_bytes=32 * 1024 * 1024,
        ),
    )(x_slab, consts["apow"],
      consts["g1"], consts["b1"], consts["w1"], consts["bias1"],
      consts["cred1"], consts["bc1"],
      consts["g2"], consts["b2"], consts["w2"], consts["bias2"],
      consts["cred2"], consts["bc2"])

    if drop_rate > 0:
        # TODO(synk): stochastic F.dropout omitted (eval-mode identity); not bitwise reproducible.
        pass

    new_features = jnp.transpose(y.reshape(N, T, B, Cout), (2, 0, 3, 1))  # (B,N,Cout,T)
    return jnp.concatenate([x_bnct, new_features], axis=2)


def init_params(key, num_input_features, growth_rate, bn_size):
    c_mid = bn_size * growth_rate
    k1, k2 = jax.random.split(key)
    return dict(
        gamma1=jnp.ones((num_input_features,), jnp.float32),
        beta1=jnp.zeros((num_input_features,), jnp.float32),
        W1=jax.random.normal(k1, (2, num_input_features, c_mid), jnp.float32)
        / jnp.sqrt(jnp.float32(num_input_features)),
        b1=jnp.zeros((c_mid,), jnp.float32),
        gamma2=jnp.ones((c_mid,), jnp.float32),
        beta2=jnp.zeros((c_mid,), jnp.float32),
        W2=jax.random.normal(k2, (4, c_mid, growth_rate), jnp.float32)
        / jnp.sqrt(jnp.float32(c_mid)),
        b2=jnp.zeros((growth_rate,), jnp.float32),
    )


if __name__ == "__main__":
    B, N, C_in, T = 2, 16, 4, 8
    growth_rate, bn_size, drop_rate = 4, 2, 0.0

    key = jax.random.PRNGKey(0)
    kx, kp = jax.random.split(key)
    x = jax.random.normal(kx, (B, N, C_in, T), jnp.float32)

    # deterministic bidirectional ring graph over N taxels: edge_index (2, 2N)
    idx = jnp.arange(N)
    src = jnp.concatenate([idx, (idx + 1) % N])
    dst = jnp.concatenate([(idx + 1) % N, idx])
    edge_index = jnp.stack([src, dst]).astype(jnp.int32)

    params = init_params(kp, C_in, growth_rate, bn_size)

    # Hoisted invariants (adjacency powers, stacked weights, BN tiles) built once.
    consts, meta = prepare_deep_layer(params, edge_index, N, B, T)
    fwd = jax.jit(functools.partial(deep_layer_forward, meta=meta, drop_rate=drop_rate))

    out = fwd(x, consts)
    out = jax.block_until_ready(out)
    assert out.shape == (B, N, C_in + growth_rate, T), out.shape
    print("KERNEL_OK")
</pallas_src>

<mosaic_0001>
module attributes {stable_mosaic.version = 11 : i64} {
  func.func @_deep_layer_kernel(%arg0: i32, %arg1: memref<16x64xf32, #tpu.memory_space<vmem>>, %arg2: memref<48x16xbf16, #tpu.memory_space<vmem>>, %arg3: memref<1x64xf32, #tpu.memory_space<vmem>>, %arg4: memref<1x64xf32, #tpu.memory_space<vmem>>, %arg5: memref<128x128xbf16, #tpu.memory_space<vmem>>, %arg6: memref<1x128xf32, #tpu.memory_space<vmem>>, %arg7: memref<64x4xf32, #tpu.memory_space<vmem>>, %arg8: memref<4x64xf32, #tpu.memory_space<vmem>>, %arg9: memref<1x128xf32, #tpu.memory_space<vmem>>, %arg10: memref<1x128xf32, #tpu.memory_space<vmem>>, %arg11: memref<512x64xbf16, #tpu.memory_space<vmem>>, %arg12: memref<1x64xf32, #tpu.memory_space<vmem>>, %arg13: memref<128x8xf32, #tpu.memory_space<vmem>>, %arg14: memref<8x128xf32, #tpu.memory_space<vmem>>, %arg15: memref<16x64xf32, #tpu.memory_space<vmem>>, %arg16: memref<16x64xf32, #tpu.memory_space<vmem>>, %arg17: memref<16x128xf32, #tpu.memory_space<vmem>>) attributes {dimension_semantics = [#tpu.dimension_semantics<arbitrary>], iteration_bounds = array<i64: 1>, scalar_prefetch = 0 : i64, scratch_operands = 2 : i64, tpu.core_type = #tpu.core_type<tc>, window_params = [{pipeline_mode = #tpu.pipeline_mode<synchronous>, transform_indices = @transform_0, window_bounds = array<i64: 16, 64>}, {pipeline_mode = #tpu.pipeline_mode<synchronous>, transform_indices = @transform_1, window_bounds = array<i64: 48, 16>}, {pipeline_mode = #tpu.pipeline_mode<synchronous>, transform_indices = @transform_2, window_bounds = array<i64: 1, 64>}, {pipeline_mode = #tpu.pipeline_mode<synchronous>, transform_indices = @transform_3, window_bounds = array<i64: 1, 64>}, {pipeline_mode = #tpu.pipeline_mode<synchronous>, transform_indices = @transform_4, window_bounds = array<i64: 128, 128>}, {pipeline_mode = #tpu.pipeline_mode<synchronous>, transform_indices = @transform_5, window_bounds = array<i64: 1, 128>}, {pipeline_mode = #tpu.pipeline_mode<synchronous>, transform_indices = @transform_6, window_bounds = array<i64: 64, 4>}, {pipeline_mode = #tpu.pipeline_mode<synchronous>, transform_indices = @transform_7, window_bounds = array<i64: 4, 64>}, {pipeline_mode = #tpu.pipeline_mode<synchronous>, transform_indices = @transform_8, window_bounds = array<i64: 1, 128>}, {pipeline_mode = #tpu.pipeline_mode<synchronous>, transform_indices = @transform_9, window_bounds = array<i64: 1, 128>}, {pipeline_mode = #tpu.pipeline_mode<synchronous>, transform_indices = @transform_10, window_bounds = array<i64: 512, 64>}, {pipeline_mode = #tpu.pipeline_mode<synchronous>, transform_indices = @transform_11, window_bounds = array<i64: 1, 64>}, {pipeline_mode = #tpu.pipeline_mode<synchronous>, transform_indices = @transform_12, window_bounds = array<i64: 128, 8>}, {pipeline_mode = #tpu.pipeline_mode<synchronous>, transform_indices = @transform_13, window_bounds = array<i64: 8, 128>}, {pipeline_mode = #tpu.pipeline_mode<synchronous>, transform_indices = @transform_14, window_bounds = array<i64: 16, 64>}]} {
    %c0 = arith.constant 0 : index
    %c0_0 = arith.constant 0 : index
    %0 = vector.load %arg1[%c0, %c0_0] : memref<16x64xf32, #tpu.memory_space<vmem>>, vector<16x64xf32>
    %c0_1 = arith.constant 0 : index
    %c0_2 = arith.constant 0 : index
    %1 = vector.load %arg3[%c0_1, %c0_2] : memref<1x64xf32, #tpu.memory_space<vmem>>, vector<1x64xf32>
    %c0_3 = arith.constant 0 : index
    %c0_4 = arith.constant 0 : index
    %2 = vector.load %arg4[%c0_3, %c0_4] : memref<1x64xf32, #tpu.memory_space<vmem>>, vector<1x64xf32>
    %c0_5 = arith.constant 0 : index
    %c0_6 = arith.constant 0 : index
    %3 = vector.load %arg7[%c0_5, %c0_6] : memref<64x4xf32, #tpu.memory_space<vmem>>, vector<64x4xf32>
    %c0_7 = arith.constant 0 : index
    %c0_8 = arith.constant 0 : index
    %4 = vector.load %arg8[%c0_7, %c0_8] : memref<4x64xf32, #tpu.memory_space<vmem>>, vector<4x64xf32>
    %cst = arith.constant dense<0.000000e+00> : vector<16x4xf32>
    %5 = tpu.matmul %0, %3, %cst {dimension_numbers = #tpu.dot_dimension_numbers<[1], [0], [0], [1], [0, 0, 1, 1], [], []>} : vector<16x64xf32>, vector<64x4xf32>, vector<16x4xf32> -> vector<16x4xf32>
    %cst_9 = arith.constant dense<0.000000e+00> : vector<4xf32>
    %6 = vector.multi_reduction <add>, %5, %cst_9 [0] : vector<16x4xf32> to vector<4xf32>
    %7 = vector.shape_cast %6 : vector<4xf32> to vector<1x4xf32>
    %cst_10 = arith.constant 3.906250e-03 : f32
    %8 = vector.broadcast %cst_10 : f32 to vector<1x4xf32>
    %9 = arith.mulf %7, %8 : vector<1x4xf32>
    %cst_11 = arith.constant dense<0.000000e+00> : vector<1x64xf32>
    %10 = tpu.matmul %9, %4, %cst_11 {dimension_numbers = #tpu.dot_dimension_numbers<[1], [0], [0], [1], [0, 0, 1, 1], [], []>} : vector<1x4xf32>, vector<4x64xf32>, vector<1x64xf32> -> vector<1x64xf32>
    %11 = vector.broadcast %10 : vector<1x64xf32> to vector<16x64xf32>
    %12 = arith.subf %0, %11 : vector<16x64xf32>
    %13 = arith.mulf %12, %12 : vector<16x64xf32>
    %cst_12 = arith.constant dense<0.000000e+00> : vector<16x4xf32>
    %14 = tpu.matmul %13, %3, %cst_12 {dimension_numbers = #tpu.dot_dimension_numbers<[1], [0], [0], [1], [0, 0, 1, 1], [], []>} : vector<16x64xf32>, vector<64x4xf32>, vector<16x4xf32> -> vector<16x4xf32>
    %cst_13 = arith.constant dense<0.000000e+00> : vector<4xf32>
    %15 = vector.multi_reduction <add>, %14, %cst_13 [0] : vector<16x4xf32> to vector<4xf32>
    %16 = vector.shape_cast %15 : vector<4xf32> to vector<1x4xf32>
    %cst_14 = arith.constant 3.906250e-03 : f32
    %17 = vector.broadcast %cst_14 : f32 to vector<1x4xf32>
    %18 = arith.mulf %16, %17 : vector<1x4xf32>
    %cst_15 = arith.constant 9.99999974E-6 : f32
    %19 = vector.broadcast %cst_15 : f32 to vector<1x4xf32>
    %20 = arith.addf %18, %19 : vector<1x4xf32>
    %21 = math.rsqrt %20 : vector<1x4xf32>
    %cst_16 = arith.constant dense<0.000000e+00> : vector<1x64xf32>
    %22 = tpu.matmul %21, %4, %cst_16 {dimension_numbers = #tpu.dot_dimension_numbers<[1], [0], [0], [1], [0, 0, 1, 1], [], []>} : vector<1x4xf32>, vector<4x64xf32>, vector<1x64xf32> -> vector<1x64xf32>
    %23 = arith.mulf %1, %22 : vector<1x64xf32>
    %24 = vector.broadcast %23 : vector<1x64xf32> to vector<16x64xf32>
    %25 = arith.mulf %12, %24 : vector<16x64xf32>
    %26 = vector.broadcast %2 : vector<1x64xf32> to vector<16x64xf32>
    %27 = arith.addf %25, %26 : vector<16x64xf32>
    %cst_17 = arith.constant 0.000000e+00 : f32
    %28 = vector.broadcast %cst_17 : f32 to vector<16x8xf32>
    %cst_18 = arith.constant 0.000000e+00 : f32
    %29 = vector.broadcast %cst_18 : f32 to vector<16x8xf32>
    %30 = vector.extract_strided_slice %27 {offsets = [0, 0], sizes = [16, 8], strides = [1, 1]} : vector<16x64xf32> to vector<16x8xf32>
    %cst_19 = arith.constant 2.000000e-01 : f32
    %31 = vector.broadcast %cst_19 : f32 to vector<16x8xf32>
    %32 = arith.mulf %31, %28 : vector<16x8xf32>
    %cst_20 = arith.constant 1.000000e+00 : f32
    %33 = vector.broadcast %cst_20 : f32 to vector<16x8xf32>
    %34 = arith.subf %33, %29 : vector<16x8xf32>
    %35 = arith.mulf %32, %34 : vector<16x8xf32>
    %36 = arith.addf %35, %30 : vector<16x8xf32>
    %cst_21 = arith.constant 5.000000e-01 : f32
    %37 = vector.broadcast %cst_21 : f32 to vector<16x8xf32>
    %38 = arith.cmpf ogt, %36, %37 : vector<16x8xf32>
    %cst_22 = arith.constant 1.000000e+00 : f32
    %cst_23 = arith.constant 0.000000e+00 : f32
    %39 = vector.broadcast %cst_22 : f32 to vector<16x8xf32>
    %40 = vector.broadcast %cst_23 : f32 to vector<16x8xf32>
    %41 = arith.select %38, %39, %40 : vector<16x8xi1>, vector<16x8xf32>
    %c0_24 = arith.constant 0 : index
    %c0_25 = arith.constant 0 : index
    %42 = vector.load %arg16[%c0_24, %c0_25] : memref<16x64xf32, #tpu.memory_space<vmem>>, vector<16x8xf32>
    tpu.vector_store %arg16[%c0_24, %c0_25], %41 {strides = array<i32>} : memref<16x64xf32, #tpu.memory_space<vmem>>, vector<16x8xf32>,
    %43 = vector.extract_strided_slice %27 {offsets = [0, 8], sizes = [16, 8], strides = [1, 1]} : vector<16x64xf32> to vector<16x8xf32>
    %cst_26 = arith.constant 2.000000e-01 : f32
    %44 = vector.broadcast %cst_26 : f32 to vector<16x8xf32>
    %45 = arith.mulf %44, %36 : vector<16x8xf32>
    %cst_27 = arith.constant 1.000000e+00 : f32
    %46 = vector.broadcast %cst_27 : f32 to vector<16x8xf32>
    %47 = arith.subf %46, %41 : vector<16x8xf32>
    %48 = arith.mulf %45, %47 : vector<16x8xf32>
    %49 = arith.addf %48, %43 : vector<16x8xf32>
    %cst_28 = arith.constant 5.000000e-01 : f32
    %50 = vector.broadcast %cst_28 : f32 to vector<16x8xf32>
    %51 = arith.cmpf ogt, %49, %50 : vector<16x8xf32>
    %cst_29 = arith.constant 1.000000e+00 : f32
    %cst_30 = arith.constant 0.000000e+00 : f32
    %52 = vector.broadcast %cst_29 : f32 to vector<16x8xf32>
    %53 = vector.broadcast %cst_30 : f32 to vector<16x8xf32>
    %54 = arith.select %51, %52, %53 : vector<16x8xi1>, vector<16x8xf32>
    %c0_31 = arith.constant 0 : index
    %c8 = arith.constant 8 : index
    %55 = vector.load %arg16[%c0_31, %c8] : memref<16x64xf32, #tpu.memory_space<vmem>>, vector<16x8xf32>
    tpu.vector_store %arg16[%c0_31, %c8], %54 {strides = array<i32>} : memref<16x64xf32, #tpu.memory_space<vmem>>, vector<16x8xf32>,
    %56 = vector.extract_strided_slice %27 {offsets = [0, 16], sizes = [16, 8], strides = [1, 1]} : vector<16x64xf32> to vector<16x8xf32>
    %cst_32 = arith.constant 2.000000e-01 : f32
    %57 = vector.broadcast %cst_32 : f32 to vector<16x8xf32>
    %58 = arith.mulf %57, %49 : vector<16x8xf32>
    %cst_33 = arith.constant 1.000000e+00 : f32
    %59 = vector.broadcast %cst_33 : f32 to vector<16x8xf32>
    %60 = arith.subf %59, %54 : vector<16x8xf32>
    %61 = arith.mulf %58, %60 : vector<16x8xf32>
    %62 = arith.addf %61, %56 : vector<16x8xf32>
    %cst_34 = arith.constant 5.000000e-01 : f32
    %63 = vector.broadcast %cst_34 : f32 to vector<16x8xf32>
    %64 = arith.cmpf ogt, %62, %63 : vector<16x8xf32>
    %cst_35 = arith.constant 1.000000e+00 : f32
    %cst_36 = arith.constant 0.000000e+00 : f32
    %65 = vector.broadcast %cst_35 : f32 to vector<16x8xf32>
    %66 = vector.broadcast %cst_36 : f32 to vector<16x8xf32>
    %67 = arith.select %64, %65, %66 : vector<16x8xi1>, vector<16x8xf32>
    %c0_37 = arith.constant 0 : index
    %c16 = arith.constant 16 : index
    %68 = vector.load %arg16[%c0_37, %c16] : memref<16x64xf32, #tpu.memory_space<vmem>>, vector<16x8xf32>
    tpu.vector_store %arg16[%c0_37, %c16], %67 {strides = array<i32>} : memref<16x64xf32, #tpu.memory_space<vmem>>, vector<16x8xf32>,
    %69 = vector.extract_strided_slice %27 {offsets = [0, 24], sizes = [16, 8], strides = [1, 1]} : vector<16x64xf32> to vector<16x8xf32>
    %cst_38 = arith.constant 2.000000e-01 : f32
    %70 = vector.broadcast %cst_38 : f32 to vector<16x8xf32>
    %71 = arith.mulf %70, %62 : vector<16x8xf32>
    %cst_39 = arith.constant 1.000000e+00 : f32
    %72 = vector.broadcast %cst_39 : f32 to vector<16x8xf32>
    %73 = arith.subf %72, %67 : vector<16x8xf32>
    %74 = arith.mulf %71, %73 : vector<16x8xf32>
    %75 = arith.addf %74, %69 : vector<16x8xf32>
    %cst_40 = arith.constant 5.000000e-01 : f32
    %76 = vector.broadcast %cst_40 : f32 to vector<16x8xf32>
    %77 = arith.cmpf ogt, %75, %76 : vector<16x8xf32>
    %cst_41 = arith.constant 1.000000e+00 : f32
    %cst_42 = arith.constant 0.000000e+00 : f32
    %78 = vector.broadcast %cst_41 : f32 to vector<16x8xf32>
    %79 = vector.broadcast %cst_42 : f32 to vector<16x8xf32>
    %80 = arith.select %77, %78, %79 : vector<16x8xi1>, vector<16x8xf32>
    %c0_43 = arith.constant 0 : index
    %c24 = arith.constant 24 : index
    %81 = vector.load %arg16[%c0_43, %c24] : memref<16x64xf32, #tpu.memory_space<vmem>>, vector<16x8xf32>
    tpu.vector_store %arg16[%c0_43, %c24], %80 {strides = array<i32>} : memref<16x64xf32, #tpu.memory_space<vmem>>, vector<16x8xf32>,
    %82 = vector.extract_strided_slice %27 {offsets = [0, 32], sizes = [16, 8], strides = [1, 1]} : vector<16x64xf32> to vector<16x8xf32>
    %cst_44 = arith.constant 2.000000e-01 : f32
    %83 = vector.broadcast %cst_44 : f32 to vector<16x8xf32>
    %84 = arith.mulf %83, %75 : vector<16x8xf32>
    %cst_45 = arith.constant 1.000000e+00 : f32
    %85 = vector.broadcast %cst_45 : f32 to vector<16x8xf32>
    %86 = arith.subf %85, %80 : vector<16x8xf32>
    %87 = arith.mulf %84, %86 : vector<16x8xf32>
    %88 = arith.addf %87, %82 : vector<16x8xf32>
    %cst_46 = arith.constant 5.000000e-01 : f32
    %89 = vector.broadcast %cst_46 : f32 to vector<16x8xf32>
    %90 = arith.cmpf ogt, %88, %89 : vector<16x8xf32>
    %cst_47 = arith.constant 1.000000e+00 : f32
    %cst_48 = arith.constant 0.000000e+00 : f32
    %91 = vector.broadcast %cst_47 : f32 to vector<16x8xf32>
    %92 = vector.broadcast %cst_48 : f32 to vector<16x8xf32>
    %93 = arith.select %90, %91, %92 : vector<16x8xi1>, vector<16x8xf32>
    %c0_49 = arith.constant 0 : index
    %c32 = arith.constant 32 : index
    %94 = vector.load %arg16[%c0_49, %c32] : memref<16x64xf32, #tpu.memory_space<vmem>>, vector<16x8xf32>
    tpu.vector_store %arg16[%c0_49, %c32], %93 {strides = array<i32>} : memref<16x64xf32, #tpu.memory_space<vmem>>, vector<16x8xf32>,
    %95 = vector.extract_strided_slice %27 {offsets = [0, 40], sizes = [16, 8], strides = [1, 1]} : vector<16x64xf32> to vector<16x8xf32>
    %cst_50 = arith.constant 2.000000e-01 : f32
    %96 = vector.broadcast %cst_50 : f32 to vector<16x8xf32>
    %97 = arith.mulf %96, %88 : vector<16x8xf32>
    %cst_51 = arith.constant 1.000000e+00 : f32
    %98 = vector.broadcast %cst_51 : f32 to vector<16x8xf32>
    %99 = arith.subf %98, %93 : vector<16x8xf32>
    %100 = arith.mulf %97, %99 : vector<16x8xf32>
    %101 = arith.addf %100, %95 : vector<16x8xf32>
    %cst_52 = arith.constant 5.000000e-01 : f32
    %102 = vector.broadcast %cst_52 : f32 to vector<16x8xf32>
    %103 = arith.cmpf ogt, %101, %102 : vector<16x8xf32>
    %cst_53 = arith.constant 1.000000e+00 : f32
    %cst_54 = arith.constant 0.000000e+00 : f32
    %104 = vector.broadcast %cst_53 : f32 to vector<16x8xf32>
    %105 = vector.broadcast %cst_54 : f32 to vector<16x8xf32>
    %106 = arith.select %103, %104, %105 : vector<16x8xi1>, vector<16x8xf32>
    %c0_55 = arith.constant 0 : index
    %c40 = arith.constant 40 : index
    %107 = vector.load %arg16[%c0_55, %c40] : memref<16x64xf32, #tpu.memory_space<vmem>>, vector<16x8xf32>
    tpu.vector_store %arg16[%c0_55, %c40], %106 {strides = array<i32>} : memref<16x64xf32, #tpu.memory_space<vmem>>, vector<16x8xf32>,
    %108 = vector.extract_strided_slice %27 {offsets = [0, 48], sizes = [16, 8], strides = [1, 1]} : vector<16x64xf32> to vector<16x8xf32>
    %cst_56 = arith.constant 2.000000e-01 : f32
    %109 = vector.broadcast %cst_56 : f32 to vector<16x8xf32>
    %110 = arith.mulf %109, %101 : vector<16x8xf32>
    %cst_57 = arith.constant 1.000000e+00 : f32
    %111 = vector.broadcast %cst_57 : f32 to vector<16x8xf32>
    %112 = arith.subf %111, %106 : vector<16x8xf32>
    %113 = arith.mulf %110, %112 : vector<16x8xf32>
    %114 = arith.addf %113, %108 : vector<16x8xf32>
    %cst_58 = arith.constant 5.000000e-01 : f32
    %115 = vector.broadcast %cst_58 : f32 to vector<16x8xf32>
    %116 = arith.cmpf ogt, %114, %115 : vector<16x8xf32>
    %cst_59 = arith.constant 1.000000e+00 : f32
    %cst_60 = arith.constant 0.000000e+00 : f32
    %117 = vector.broadcast %cst_59 : f32 to vector<16x8xf32>
    %118 = vector.broadcast %cst_60 : f32 to vector<16x8xf32>
    %119 = arith.select %116, %117, %118 : vector<16x8xi1>, vector<16x8xf32>
    %c0_61 = arith.constant 0 : index
    %c48 = arith.constant 48 : index
    %120 = vector.load %arg16[%c0_61, %c48] : memref<16x64xf32, #tpu.memory_space<vmem>>, vector<16x8xf32>
    tpu.vector_store %arg16[%c0_61, %c48], %119 {strides = array<i32>} : memref<16x64xf32, #tpu.memory_space<vmem>>, vector<16x8xf32>,
    %121 = vector.extract_strided_slice %27 {offsets = [0, 56], sizes = [16, 8], strides = [1, 1]} : vector<16x64xf32> to vector<16x8xf32>
    %cst_62 = arith.constant 2.000000e-01 : f32
    %122 = vector.broadcast %cst_62 : f32 to vector<16x8xf32>
    %123 = arith.mulf %122, %114 : vector<16x8xf32>
    %cst_63 = arith.constant 1.000000e+00 : f32
    %124 = vector.broadcast %cst_63 : f32 to vector<16x8xf32>
    %125 = arith.subf %124, %119 : vector<16x8xf32>
    %126 = arith.mulf %123, %125 : vector<16x8xf32>
    %127 = arith.addf %126, %121 : vector<16x8xf32>
    %cst_64 = arith.constant 5.000000e-01 : f32
    %128 = vector.broadcast %cst_64 : f32 to vector<16x8xf32>
    %129 = arith.cmpf ogt, %127, %128 : vector<16x8xf32>
    %cst_65 = arith.constant 1.000000e+00 : f32
    %cst_66 = arith.constant 0.000000e+00 : f32
    %130 = vector.broadcast %cst_65 : f32 to vector<16x8xf32>
    %131 = vector.broadcast %cst_66 : f32 to vector<16x8xf32>
    %132 = arith.select %129, %130, %131 : vector<16x8xi1>, vector<16x8xf32>
    %c0_67 = arith.constant 0 : index
    %c56 = arith.constant 56 : index
    %133 = vector.load %arg16[%c0_67, %c56] : memref<16x64xf32, #tpu.memory_space<vmem>>, vector<16x8xf32>
    tpu.vector_store %arg16[%c0_67, %c56], %132 {strides = array<i32>} : memref<16x64xf32, #tpu.memory_space<vmem>>, vector<16x8xf32>,
    %c0_68 = arith.constant 0 : index
    %c0_69 = arith.constant 0 : index
    %134 = vector.load %arg16[%c0_68, %c0_69] : memref<16x64xf32, #tpu.memory_space<vmem>>, vector<16x64xf32>
    %135 = arith.truncf %134 : vector<16x64xf32> to vector<16x64xbf16>
    %c0_70 = arith.constant 0 : index
    %c0_71 = arith.constant 0 : index
    %136 = vector.load %arg2[%c0_70, %c0_71] : memref<48x16xbf16, #tpu.memory_space<vmem>>, vector<16x16xbf16>
    %cst_72 = arith.constant dense<0.000000e+00> : vector<16x64xf32>
    %137 = tpu.matmul %136, %135, %cst_72 {dimension_numbers = #tpu.dot_dimension_numbers<[1], [0], [0], [1], [0, 0, 1, 1], [], []>} : vector<16x16xbf16>, vector<16x64xbf16>, vector<16x64xf32> -> vector<16x64xf32>
    %138 = arith.truncf %137 : vector<16x64xf32> to vector<16x64xbf16>
    %c0_73 = arith.constant 0 : index
    %c0_74 = arith.constant 0 : index
    %139 = vector.load %arg5[%c0_73, %c0_74] : memref<128x128xbf16, #tpu.memory_space<vmem>>, vector<64x128xbf16>
    %cst_75 = arith.constant dense<0.000000e+00> : vector<16x128xf32>
    %140 = tpu.matmul %135, %139, %cst_75 {dimension_numbers = #tpu.dot_dimension_numbers<[1], [0], [0], [1], [0, 0, 1, 1], [], []>} : vector<16x64xbf16>, vector<64x128xbf16>, vector<16x128xf32> -> vector<16x128xf32>
    %c64 = arith.constant 64 : index
    %c0_76 = arith.constant 0 : index
    %141 = vector.load %arg5[%c64, %c0_76] : memref<128x128xbf16, #tpu.memory_space<vmem>>, vector<64x128xbf16>
    %cst_77 = arith.constant dense<0.000000e+00> : vector<16x128xf32>
    %142 = tpu.matmul %138, %141, %cst_77 {dimension_numbers = #tpu.dot_dimension_numbers<[1], [0], [0], [1], [0, 0, 1, 1], [], []>} : vector<16x64xbf16>, vector<64x128xbf16>, vector<16x128xf32> -> vector<16x128xf32>
    %143 = arith.addf %140, %142 : vector<16x128xf32>
    %c0_78 = arith.constant 0 : index
    %c0_79 = arith.constant 0 : index
    %144 = vector.load %arg6[%c0_78, %c0_79] : memref<1x128xf32, #tpu.memory_space<vmem>>, vector<1x128xf32>
    %145 = vector.broadcast %144 : vector<1x128xf32> to vector<16x128xf32>
    %146 = arith.addf %143, %145 : vector<16x128xf32>
    %c0_80 = arith.constant 0 : index
    %c0_81 = arith.constant 0 : index
    %147 = vector.load %arg9[%c0_80, %c0_81] : memref<1x128xf32, #tpu.memory_space<vmem>>, vector<1x128xf32>
    %c0_82 = arith.constant 0 : index
    %c0_83 = arith.constant 0 : index
    %148 = vector.load %arg10[%c0_82, %c0_83] : memref<1x128xf32, #tpu.memory_space<vmem>>, vector<1x128xf32>
    %c0_84 = arith.constant 0 : index
    %c0_85 = arith.constant 0 : index
    %149 = vector.load %arg13[%c0_84, %c0_85] : memref<128x8xf32, #tpu.memory_space<vmem>>, vector<128x8xf32>
    %c0_86 = arith.constant 0 : index
    %c0_87 = arith.constant 0 : index
    %150 = vector.load %arg14[%c0_86, %c0_87] : memref<8x128xf32, #tpu.memory_space<vmem>>, vector<8x128xf32>
    %cst_88 = arith.constant dense<0.000000e+00> : vector<16x8xf32>
    %151 = tpu.matmul %146, %149, %cst_88 {dimension_numbers = #tpu.dot_dimension_numbers<[1], [0], [0], [1], [0, 0, 1, 1], [], []>} : vector<16x128xf32>, vector<128x8xf32>, vector<16x8xf32> -> vector<16x8xf32>
    %cst_89 = arith.constant dense<0.000000e+00> : vector<8xf32>
    %152 = vector.multi_reduction <add>, %151, %cst_89 [0] : vector<16x8xf32> to vector<8xf32>
    %153 = vector.shape_cast %152 : vector<8xf32> to vector<1x8xf32>
    %cst_90 = arith.constant 3.906250e-03 : f32
    %154 = vector.broadcast %cst_90 : f32 to vector<1x8xf32>
    %155 = arith.mulf %153, %154 : vector<1x8xf32>
    %cst_91 = arith.constant dense<0.000000e+00> : vector<1x128xf32>
    %156 = tpu.matmul %155, %150, %cst_91 {dimension_numbers = #tpu.dot_dimension_numbers<[1], [0], [0], [1], [0, 0, 1, 1], [], []>} : vector<1x8xf32>, vector<8x128xf32>, vector<1x128xf32> -> vector<1x128xf32>
    %157 = vector.broadcast %156 : vector<1x128xf32> to vector<16x128xf32>
    %158 = arith.subf %146, %157 : vector<16x128xf32>
    %159 = arith.mulf %158, %158 : vector<16x128xf32>
    %cst_92 = arith.constant dense<0.000000e+00> : vector<16x8xf32>
    %160 = tpu.matmul %159, %149, %cst_92 {dimension_numbers = #tpu.dot_dimension_numbers<[1], [0], [0], [1], [0, 0, 1, 1], [], []>} : vector<16x128xf32>, vector<128x8xf32>, vector<16x8xf32> -> vector<16x8xf32>
    %cst_93 = arith.constant dense<0.000000e+00> : vector<8xf32>
    %161 = vector.multi_reduction <add>, %160, %cst_93 [0] : vector<16x8xf32> to vector<8xf32>
    %162 = vector.shape_cast %161 : vector<8xf32> to vector<1x8xf32>
    %cst_94 = arith.constant 3.906250e-03 : f32
    %163 = vector.broadcast %cst_94 : f32 to vector<1x8xf32>
    %164 = arith.mulf %162, %163 : vector<1x8xf32>
    %cst_95 = arith.constant 9.99999974E-6 : f32
    %165 = vector.broadcast %cst_95 : f32 to vector<1x8xf32>
    %166 = arith.addf %164, %165 : vector<1x8xf32>
    %167 = math.rsqrt %166 : vector<1x8xf32>
    %cst_96 = arith.constant dense<0.000000e+00> : vector<1x128xf32>
    %168 = tpu.matmul %167, %150, %cst_96 {dimension_numbers = #tpu.dot_dimension_numbers<[1], [0], [0], [1], [0, 0, 1, 1], [], []>} : vector<1x8xf32>, vector<8x128xf32>, vector<1x128xf32> -> vector<1x128xf32>
    %169 = arith.mulf %147, %168 : vector<1x128xf32>
    %170 = vector.broadcast %169 : vector<1x128xf32> to vector<16x128xf32>
    %171 = arith.mulf %158, %170 : vector<16x128xf32>
    %172 = vector.broadcast %148 : vector<1x128xf32> to vector<16x128xf32>
    %173 = arith.addf %171, %172 : vector<16x128xf32>
    %cst_97 = arith.constant 0.000000e+00 : f32
    %174 = vector.broadcast %cst_97 : f32 to vector<16x16xf32>
    %cst_98 = arith.constant 0.000000e+00 : f32
    %175 = vector.broadcast %cst_98 : f32 to vector<16x16xf32>
    %176 = vector.extract_strided_slice %173 {offsets = [0, 0], sizes = [16, 16], strides = [1, 1]} : vector<16x128xf32> to vector<16x16xf32>
    %cst_99 = arith.constant 2.000000e-01 : f32
    %177 = vector.broadcast %cst_99 : f32 to vector<16x16xf32>
    %178 = arith.mulf %177, %174 : vector<16x16xf32>
    %cst_100 = arith.constant 1.000000e+00 : f32
    %179 = vector.broadcast %cst_100 : f32 to vector<16x16xf32>
    %180 = arith.subf %179, %175 : vector<16x16xf32>
    %181 = arith.mulf %178, %180 : vector<16x16xf32>
    %182 = arith.addf %181, %176 : vector<16x16xf32>
    %cst_101 = arith.constant 5.000000e-01 : f32
    %183 = vector.broadcast %cst_101 : f32 to vector<16x16xf32>
    %184 = arith.cmpf ogt, %182, %183 : vector<16x16xf32>
    %cst_102 = arith.constant 1.000000e+00 : f32
    %cst_103 = arith.constant 0.000000e+00 : f32
    %185 = vector.broadcast %cst_102 : f32 to vector<16x16xf32>
    %186 = vector.broadcast %cst_103 : f32 to vector<16x16xf32>
    %187 = arith.select %184, %185, %186 : vector<16x16xi1>, vector<16x16xf32>
    %c0_104 = arith.constant 0 : index
    %c0_105 = arith.constant 0 : index
    %188 = vector.load %arg17[%c0_104, %c0_105] : memref<16x128xf32, #tpu.memory_space<vmem>>, vector<16x16xf32>
    tpu.vector_store %arg17[%c0_104, %c0_105], %187 {strides = array<i32>} : memref<16x128xf32, #tpu.memory_space<vmem>>, vector<16x16xf32>,
    %189 = vector.extract_strided_slice %173 {offsets = [0, 16], sizes = [16, 16], strides = [1, 1]} : vector<16x128xf32> to vector<16x16xf32>
    %cst_106 = arith.constant 2.000000e-01 : f32
    %190 = vector.broadcast %cst_106 : f32 to vector<16x16xf32>
    %191 = arith.mulf %190, %182 : vector<16x16xf32>
    %cst_107 = arith.constant 1.000000e+00 : f32
    %192 = vector.broadcast %cst_107 : f32 to vector<16x16xf32>
    %193 = arith.subf %192, %187 : vector<16x16xf32>
    %194 = arith.mulf %191, %193 : vector<16x16xf32>
    %195 = arith.addf %194, %189 : vector<16x16xf32>
    %cst_108 = arith.constant 5.000000e-01 : f32
    %196 = vector.broadcast %cst_108 : f32 to vector<16x16xf32>
    %197 = arith.cmpf ogt, %195, %196 : vector<16x16xf32>
    %cst_109 = arith.constant 1.000000e+00 : f32
    %cst_110 = arith.constant 0.000000e+00 : f32
    %198 = vector.broadcast %cst_109 : f32 to vector<16x16xf32>
    %199 = vector.broadcast %cst_110 : f32 to vector<16x16xf32>
    %200 = arith.select %197, %198, %199 : vector<16x16xi1>, vector<16x16xf32>
    %c0_111 = arith.constant 0 : index
    %c16_112 = arith.constant 16 : index
    %201 = vector.load %arg17[%c0_111, %c16_112] : memref<16x128xf32, #tpu.memory_space<vmem>>, vector<16x16xf32>
    tpu.vector_store %arg17[%c0_111, %c16_112], %200 {strides = array<i32>} : memref<16x128xf32, #tpu.memory_space<vmem>>, vector<16x16xf32>,
    %202 = vector.extract_strided_slice %173 {offsets = [0, 32], sizes = [16, 16], strides = [1, 1]} : vector<16x128xf32> to vector<16x16xf32>
    %cst_113 = arith.constant 2.000000e-01 : f32
    %203 = vector.broadcast %cst_113 : f32 to vector<16x16xf32>
    %204 = arith.mulf %203, %195 : vector<16x16xf32>
    %cst_114 = arith.constant 1.000000e+00 : f32
    %205 = vector.broadcast %cst_114 : f32 to vector<16x16xf32>
    %206 = arith.subf %205, %200 : vector<16x16xf32>
    %207 = arith.mulf %204, %206 : vector<16x16xf32>
    %208 = arith.addf %207, %202 : vector<16x16xf32>
    %cst_115 = arith.constant 5.000000e-01 : f32
    %209 = vector.broadcast %cst_115 : f32 to vector<16x16xf32>
    %210 = arith.cmpf ogt, %208, %209 : vector<16x16xf32>
    %cst_116 = arith.constant 1.000000e+00 : f32
    %cst_117 = arith.constant 0.000000e+00 : f32
    %211 = vector.broadcast %cst_116 : f32 to vector<16x16xf32>
    %212 = vector.broadcast %cst_117 : f32 to vector<16x16xf32>
    %213 = arith.select %210, %211, %212 : vector<16x16xi1>, vector<16x16xf32>
    %c0_118 = arith.constant 0 : index
    %c32_119 = arith.constant 32 : index
    %214 = vector.load %arg17[%c0_118, %c32_119] : memref<16x128xf32, #tpu.memory_space<vmem>>, vector<16x16xf32>
    tpu.vector_store %arg17[%c0_118, %c32_119], %213 {strides = array<i32>} : memref<16x128xf32, #tpu.memory_space<vmem>>, vector<16x16xf32>,
    %215 = vector.extract_strided_slice %173 {offsets = [0, 48], sizes = [16, 16], strides = [1, 1]} : vector<16x128xf32> to vector<16x16xf32>
    %cst_120 = arith.constant 2.000000e-01 : f32
    %216 = vector.broadcast %cst_120 : f32 to vector<16x16xf32>
    %217 = arith.mulf %216, %208 : vector<16x16xf32>
    %cst_121 = arith.constant 1.000000e+00 : f32
    %218 = vector.broadcast %cst_121 : f32 to vector<16x16xf32>
    %219 = arith.subf %218, %213 : vector<16x16xf32>
    %220 = arith.mulf %217, %219 : vector<16x16xf32>
    %221 = arith.addf %220, %215 : vector<16x16xf32>
    %cst_122 = arith.constant 5.000000e-01 : f32
    %222 = vector.broadcast %cst_122 : f32 to vector<16x16xf32>
    %223 = arith.cmpf ogt, %221, %222 : vector<16x16xf32>
    %cst_123 = arith.constant 1.000000e+00 : f32
    %cst_124 = arith.constant 0.000000e+00 : f32
    %224 = vector.broadcast %cst_123 : f32 to vector<16x16xf32>
    %225 = vector.broadcast %cst_124 : f32 to vector<16x16xf32>
    %226 = arith.select %223, %224, %225 : vector<16x16xi1>, vector<16x16xf32>
    %c0_125 = arith.constant 0 : index
    %c48_126 = arith.constant 48 : index
    %227 = vector.load %arg17[%c0_125, %c48_126] : memref<16x128xf32, #tpu.memory_space<vmem>>, vector<16x16xf32>
    tpu.vector_store %arg17[%c0_125, %c48_126], %226 {strides = array<i32>} : memref<16x128xf32, #tpu.memory_space<vmem>>, vector<16x16xf32>,
    %228 = vector.extract_strided_slice %173 {offsets = [0, 64], sizes = [16, 16], strides = [1, 1]} : vector<16x128xf32> to vector<16x16xf32>
    %cst_127 = arith.constant 2.000000e-01 : f32
    %229 = vector.broadcast %cst_127 : f32 to vector<16x16xf32>
    %230 = arith.mulf %229, %221 : vector<16x16xf32>
    %cst_128 = arith.constant 1.000000e+00 : f32
    %231 = vector.broadcast %cst_128 : f32 to vector<16x16xf32>
    %232 = arith.subf %231, %226 : vector<16x16xf32>
    %233 = arith.mulf %230, %232 : vector<16x16xf32>
    %234 = arith.addf %233, %228 : vector<16x16xf32>
    %cst_129 = arith.constant 5.000000e-01 : f32
    %235 = vector.broadcast %cst_129 : f32 to vector<16x16xf32>
    %236 = arith.cmpf ogt, %234, %235 : vector<16x16xf32>
    %cst_130 = arith.constant 1.000000e+00 : f32
    %cst_131 = arith.constant 0.000000e+00 : f32
    %237 = vector.broadcast %cst_130 : f32 to vector<16x16xf32>
    %238 = vector.broadcast %cst_131 : f32 to vector<16x16xf32>
    %239 = arith.select %236, %237, %238 : vector<16x16xi1>, vector<16x16xf32>
    %c0_132 = arith.constant 0 : index
    %c64_133 = arith.constant 64 : index
    %240 = vector.load %arg17[%c0_132, %c64_133] : memref<16x128xf32, #tpu.memory_space<vmem>>, vector<16x16xf32>
    tpu.vector_store %arg17[%c0_132, %c64_133], %239 {strides = array<i32>} : memref<16x128xf32, #tpu.memory_space<vmem>>, vector<16x16xf32>,
    %241 = vector.extract_strided_slice %173 {offsets = [0, 80], sizes = [16, 16], strides = [1, 1]} : vector<16x128xf32> to vector<16x16xf32>
    %cst_134 = arith.constant 2.000000e-01 : f32
    %242 = vector.broadcast %cst_134 : f32 to vector<16x16xf32>
    %243 = arith.mulf %242, %234 : vector<16x16xf32>
    %cst_135 = arith.constant 1.000000e+00 : f32
    %244 = vector.broadcast %cst_135 : f32 to vector<16x16xf32>
    %245 = arith.subf %244, %239 : vector<16x16xf32>
    %246 = arith.mulf %243, %245 : vector<16x16xf32>
    %247 = arith.addf %246, %241 : vector<16x16xf32>
    %cst_136 = arith.constant 5.000000e-01 : f32
    %248 = vector.broadcast %cst_136 : f32 to vector<16x16xf32>
    %249 = arith.cmpf ogt, %247, %248 : vector<16x16xf32>
    %cst_137 = arith.constant 1.000000e+00 : f32
    %cst_138 = arith.constant 0.000000e+00 : f32
    %250 = vector.broadcast %cst_137 : f32 to vector<16x16xf32>
    %251 = vector.broadcast %cst_138 : f32 to vector<16x16xf32>
    %252 = arith.select %249, %250, %251 : vector<16x16xi1>, vector<16x16xf32>
    %c0_139 = arith.constant 0 : index
    %c80 = arith.constant 80 : index
    %253 = vector.load %arg17[%c0_139, %c80] : memref<16x128xf32, #tpu.memory_space<vmem>>, vector<16x16xf32>
    tpu.vector_store %arg17[%c0_139, %c80], %252 {strides = array<i32>} : memref<16x128xf32, #tpu.memory_space<vmem>>, vector<16x16xf32>,
    %254 = vector.extract_strided_slice %173 {offsets = [0, 96], sizes = [16, 16], strides = [1, 1]} : vector<16x128xf32> to vector<16x16xf32>
    %cst_140 = arith.constant 2.000000e-01 : f32
    %255 = vector.broadcast %cst_140 : f32 to vector<16x16xf32>
    %256 = arith.mulf %255, %247 : vector<16x16xf32>
    %cst_141 = arith.constant 1.000000e+00 : f32
    %257 = vector.broadcast %cst_141 : f32 to vector<16x16xf32>
    %258 = arith.subf %257, %252 : vector<16x16xf32>
    %259 = arith.mulf %256, %258 : vector<16x16xf32>
    %260 = arith.addf %259, %254 : vector<16x16xf32>
    %cst_142 = arith.constant 5.000000e-01 : f32
    %261 = vector.broadcast %cst_142 : f32 to vector<16x16xf32>
    %262 = arith.cmpf ogt, %260, %261 : vector<16x16xf32>
    %cst_143 = arith.constant 1.000000e+00 : f32
    %cst_144 = arith.constant 0.000000e+00 : f32
    %263 = vector.broadcast %cst_143 : f32 to vector<16x16xf32>
    %264 = vector.broadcast %cst_144 : f32 to vector<16x16xf32>
    %265 = arith.select %262, %263, %264 : vector<16x16xi1>, vector<16x16xf32>
    %c0_145 = arith.constant 0 : index
    %c96 = arith.constant 96 : index
    %266 = vector.load %arg17[%c0_145, %c96] : memref<16x128xf32, #tpu.memory_space<vmem>>, vector<16x16xf32>
    tpu.vector_store %arg17[%c0_145, %c96], %265 {strides = array<i32>} : memref<16x128xf32, #tpu.memory_space<vmem>>, vector<16x16xf32>,
    %267 = vector.extract_strided_slice %173 {offsets = [0, 112], sizes = [16, 16], strides = [1, 1]} : vector<16x128xf32> to vector<16x16xf32>
    %cst_146 = arith.constant 2.000000e-01 : f32
    %268 = vector.broadcast %cst_146 : f32 to vector<16x16xf32>
    %269 = arith.mulf %268, %260 : vector<16x16xf32>
    %cst_147 = arith.constant 1.000000e+00 : f32
    %270 = vector.broadcast %cst_147 : f32 to vector<16x16xf32>
    %271 = arith.subf %270, %265 : vector<16x16xf32>
    %272 = arith.mulf %269, %271 : vector<16x16xf32>
    %273 = arith.addf %272, %267 : vector<16x16xf32>
    %cst_148 = arith.constant 5.000000e-01 : f32
    %274 = vector.broadcast %cst_148 : f32 to vector<16x16xf32>
    %275 = arith.cmpf ogt, %273, %274 : vector<16x16xf32>
    %cst_149 = arith.constant 1.000000e+00 : f32
    %cst_150 = arith.constant 0.000000e+00 : f32
    %276 = vector.broadcast %cst_149 : f32 to vector<16x16xf32>
    %277 = vector.broadcast %cst_150 : f32 to vector<16x16xf32>
    %278 = arith.select %275, %276, %277 : vector<16x16xi1>, vector<16x16xf32>
    %c0_151 = arith.constant 0 : index
    %c112 = arith.constant 112 : index
    %279 = vector.load %arg17[%c0_151, %c112] : memref<16x128xf32, #tpu.memory_space<vmem>>, vector<16x16xf32>
    tpu.vector_store %arg17[%c0_151, %c112], %278 {strides = array<i32>} : memref<16x128xf32, #tpu.memory_space<vmem>>, vector<16x16xf32>,
    %c0_152 = arith.constant 0 : index
    %c0_153 = arith.constant 0 : index
    %280 = vector.load %arg17[%c0_152, %c0_153] : memref<16x128xf32, #tpu.memory_space<vmem>>, vector<16x128xf32>
    %281 = arith.truncf %280 : vector<16x128xf32> to vector<16x128xbf16>
    %c0_154 = arith.constant 0 : index
    %c0_155 = arith.constant 0 : index
    %282 = vector.load %arg2[%c0_154, %c0_155] : memref<48x16xbf16, #tpu.memory_space<vmem>>, vector<48x16xbf16>
    %cst_156 = arith.constant dense<0.000000e+00> : vector<48x128xf32>
    %283 = tpu.matmul %282, %281, %cst_156 {dimension_numbers = #tpu.dot_dimension_numbers<[1], [0], [0], [1], [0, 0, 1, 1], [], []>} : vector<48x16xbf16>, vector<16x128xbf16>, vector<48x128xf32> -> vector<48x128xf32>
    %284 = arith.truncf %283 : vector<48x128xf32> to vector<48x128xbf16>
    %c0_157 = arith.constant 0 : index
    %c0_158 = arith.constant 0 : index
    %285 = vector.load %arg11[%c0_157, %c0_158] : memref<512x64xbf16, #tpu.memory_space<vmem>>, vector<128x64xbf16>
    %cst_159 = arith.constant dense<0.000000e+00> : vector<16x64xf32>
    %286 = tpu.matmul %281, %285, %cst_159 {dimension_numbers = #tpu.dot_dimension_numbers<[1], [0], [0], [1], [0, 0, 1, 1], [], []>} : vector<16x128xbf16>, vector<128x64xbf16>, vector<16x64xf32> -> vector<16x64xf32>
    %287 = vector.extract_strided_slice %284 {offsets = [0, 0], sizes = [16, 128], strides = [1, 1]} : vector<48x128xbf16> to vector<16x128xbf16>
    %c128 = arith.constant 128 : index
    %c0_160 = arith.constant 0 : index
    %288 = vector.load %arg11[%c128, %c0_160] : memref<512x64xbf16, #tpu.memory_space<vmem>>, vector<128x64xbf16>
    %cst_161 = arith.constant dense<0.000000e+00> : vector<16x64xf32>
    %289 = tpu.matmul %287, %288, %cst_161 {dimension_numbers = #tpu.dot_dimension_numbers<[1], [0], [0], [1], [0, 0, 1, 1], [], []>} : vector<16x128xbf16>, vector<128x64xbf16>, vector<16x64xf32> -> vector<16x64xf32>
    %290 = arith.addf %286, %289 : vector<16x64xf32>
    %291 = vector.extract_strided_slice %284 {offsets = [16, 0], sizes = [16, 128], strides = [1, 1]} : vector<48x128xbf16> to vector<16x128xbf16>
    %c256 = arith.constant 256 : index
    %c0_162 = arith.constant 0 : index
    %292 = vector.load %arg11[%c256, %c0_162] : memref<512x64xbf16, #tpu.memory_space<vmem>>, vector<128x64xbf16>
    %cst_163 = arith.constant dense<0.000000e+00> : vector<16x64xf32>
    %293 = tpu.matmul %291, %292, %cst_163 {dimension_numbers = #tpu.dot_dimension_numbers<[1], [0], [0], [1], [0, 0, 1, 1], [], []>} : vector<16x128xbf16>, vector<128x64xbf16>, vector<16x64xf32> -> vector<16x64xf32>
    %294 = arith.addf %290, %293 : vector<16x64xf32>
    %295 = vector.extract_strided_slice %284 {offsets = [32, 0], sizes = [16, 128], strides = [1, 1]} : vector<48x128xbf16> to vector<16x128xbf16>
    %c384 = arith.constant 384 : index
    %c0_164 = arith.constant 0 : index
    %296 = vector.load %arg11[%c384, %c0_164] : memref<512x64xbf16, #tpu.memory_space<vmem>>, vector<128x64xbf16>
    %cst_165 = arith.constant dense<0.000000e+00> : vector<16x64xf32>
    %297 = tpu.matmul %295, %296, %cst_165 {dimension_numbers = #tpu.dot_dimension_numbers<[1], [0], [0], [1], [0, 0, 1, 1], [], []>} : vector<16x128xbf16>, vector<128x64xbf16>, vector<16x64xf32> -> vector<16x64xf32>
    %298 = arith.addf %294, %297 : vector<16x64xf32>
    %c0_166 = arith.constant 0 : index
    %c0_167 = arith.constant 0 : index
    %299 = vector.load %arg12[%c0_166, %c0_167] : memref<1x64xf32, #tpu.memory_space<vmem>>, vector<1x64xf32>
    %300 = vector.broadcast %299 : vector<1x64xf32> to vector<16x64xf32>
    %301 = arith.addf %298, %300 : vector<16x64xf32>
    %c0_168 = arith.constant 0 : index
    %c0_169 = arith.constant 0 : index
    %302 = vector.load %arg15[%c0_168, %c0_169] : memref<16x64xf32, #tpu.memory_space<vmem>>, vector<16x64xf32>
    tpu.vector_store %arg15[%c0_168, %c0_169], %301 {strides = array<i32>} : memref<16x64xf32, #tpu.memory_space<vmem>>, vector<16x64xf32>,
    return
  }
  func.func @transform_0(%arg0: i32) -> (i32, i32) {
    %c0_i32 = arith.constant 0 : i32
    %c0_i32_0 = arith.constant 0 : i32
    %c0_i32_1 = arith.constant 0 : i32
    return %c0_i32, %c0_i32_0 : i32, i32
  }
  func.func @transform_1(%arg0: i32) -> (i32, i32) {
    %c0_i32 = arith.constant 0 : i32
    %c0_i32_0 = arith.constant 0 : i32
    %c0_i32_1 = arith.constant 0 : i32
    return %c0_i32, %c0_i32_0 : i32, i32
  }
  func.func @transform_2(%arg0: i32) -> (i32, i32) {
    %c0_i32 = arith.constant 0 : i32
    %c0_i32_0 = arith.constant 0 : i32
    %c0_i32_1 = arith.constant 0 : i32
    return %c0_i32, %c0_i32_0 : i32, i32
  }
  func.func @transform_3(%arg0: i32) -> (i32, i32) {
    %c0_i32 = arith.constant 0 : i32
    %c0_i32_0 = arith.constant 0 : i32
    %c0_i32_1 = arith.constant 0 : i32
    return %c0_i32, %c0_i32_0 : i32, i32
  }
  func.func @transform_4(%arg0: i32) -> (i32, i32) {
    %c0_i32 = arith.constant 0 : i32
    %c0_i32_0 = arith.constant 0 : i32
    %c0_i32_1 = arith.constant 0 : i32
    return %c0_i32, %c0_i32_0 : i32, i32
  }
  func.func @transform_5(%arg0: i32) -> (i32, i32) {
    %c0_i32 = arith.constant 0 : i32
    %c0_i32_0 = arith.constant 0 : i32
    %c0_i32_1 = arith.constant 0 : i32
    return %c0_i32, %c0_i32_0 : i32, i32
  }
  func.func @transform_6(%arg0: i32) -> (i32, i32) {
    %c0_i32 = arith.constant 0 : i32
    %c0_i32_0 = arith.constant 0 : i32
    %c0_i32_1 = arith.constant 0 : i32
    return %c0_i32, %c0_i32_0 : i32, i32
  }
  func.func @transform_7(%arg0: i32) -> (i32, i32) {
    %c0_i32 = arith.constant 0 : i32
    %c0_i32_0 = arith.constant 0 : i32
    %c0_i32_1 = arith.constant 0 : i32
    return %c0_i32, %c0_i32_0 : i32, i32
  }
  func.func @transform_8(%arg0: i32) -> (i32, i32) {
    %c0_i32 = arith.constant 0 : i32
    %c0_i32_0 = arith.constant 0 : i32
    %c0_i32_1 = arith.constant 0 : i32
    return %c0_i32, %c0_i32_0 : i32, i32
  }
  func.func @transform_9(%arg0: i32) -> (i32, i32) {
    %c0_i32 = arith.constant 0 : i32
    %c0_i32_0 = arith.constant 0 : i32
    %c0_i32_1 = arith.constant 0 : i32
    return %c0_i32, %c0_i32_0 : i32, i32
  }
  func.func @transform_10(%arg0: i32) -> (i32, i32) {
    %c0_i32 = arith.constant 0 : i32
    %c0_i32_0 = arith.constant 0 : i32
    %c0_i32_1 = arith.constant 0 : i32
    return %c0_i32, %c0_i32_0 : i32, i32
  }
  func.func @transform_11(%arg0: i32) -> (i32, i32) {
    %c0_i32 = arith.constant 0 : i32
    %c0_i32_0 = arith.constant 0 : i32
    %c0_i32_1 = arith.constant 0 : i32
    return %c0_i32, %c0_i32_0 : i32, i32
  }
  func.func @transform_12(%arg0: i32) -> (i32, i32) {
    %c0_i32 = arith.constant 0 : i32
    %c0_i32_0 = arith.constant 0 : i32
    %c0_i32_1 = arith.constant 0 : i32
    return %c0_i32, %c0_i32_0 : i32, i32
  }
  func.func @transform_13(%arg0: i32) -> (i32, i32) {
    %c0_i32 = arith.constant 0 : i32
    %c0_i32_0 = arith.constant 0 : i32
    %c0_i32_1 = arith.constant 0 : i32
    return %c0_i32, %c0_i32_0 : i32, i32
  }
  func.func @transform_14(%arg0: i32) -> (i32, i32) {
    %c0_i32 = arith.constant 0 : i32
    %c0_i32_0 = arith.constant 0 : i32
    %c0_i32_1 = arith.constant 0 : i32
    return %c0_i32, %c0_i32_0 : i32, i32
  }
}

</mosaic_0001>

<llo_original>
// kernel: deep_layer_forward.1
$region0: #{deep_layer_forward.1}
  #allocation0 [shape = 'u32[]', space=smem, size = 0x4, offset = 0x4, fixed_abs, tag = 'smem constant byte address 0x4 - core index']
  #allocation1 [shape = 'u32[144,128]{1,0:T(1,128)}', space=vmem, size = 0x12000, scoped, tag = 'internal scratch']
  #allocation2 [shape = 'f32[16,64]{1,0:T(8,128)}', space=vmem, size = 0x2000, scoped, tag = 'scratch operand']
  #allocation3 [shape = 'f32[16,128]{1,0:T(8,128)}', space=vmem, size = 0x2000, scoped, tag = 'scratch operand']
  %s0 = inlined_call_operand.vmem [shape: f32[16,64], index: 0, kind: input, shape index: {}]
  %s1 = inlined_call_operand.vmem [shape: bf16[48,16], index: 1, kind: input, shape index: {}]
  %s2 = inlined_call_operand.vmem [shape: f32[1,64], index: 2, kind: input, shape index: {}]
  %s3 = inlined_call_operand.vmem [shape: f32[1,64], index: 3, kind: input, shape index: {}]
  %s4 = inlined_call_operand.vmem [shape: bf16[128,128], index: 4, kind: input, shape index: {}]
  %s5 = inlined_call_operand.vmem [shape: f32[1,128], index: 5, kind: input, shape index: {}]
  %s6 = inlined_call_operand.vmem [shape: f32[64,4], index: 6, kind: input, shape index: {}]
  %s7 = inlined_call_operand.vmem [shape: f32[4,64], index: 7, kind: input, shape index: {}]
  %s8 = inlined_call_operand.vmem [shape: f32[1,128], index: 8, kind: input, shape index: {}]
  %s9 = inlined_call_operand.vmem [shape: f32[1,128], index: 9, kind: input, shape index: {}]
  %s10 = inlined_call_operand.vmem [shape: bf16[512,64], index: 10, kind: input, shape index: {}]
  %s11 = inlined_call_operand.vmem [shape: f32[1,64], index: 11, kind: input, shape index: {}]
  %s12 = inlined_call_operand.vmem [shape: f32[128,8], index: 12, kind: input, shape index: {}]
  %s13 = inlined_call_operand.vmem [shape: f32[8,128], index: 13, kind: input, shape index: {}]
  %s14 = inlined_call_operand.vmem [shape: f32[16,64], index: 14, kind: output, shape index: {}]
  %s15 = sld [smem:[#allocation0]]
  $region66: #{deep_layer_forward.1} parent=0
    _
  %s17 = ssub.s32 1, %s15
  %s18 = scalar_select 0, %s17, %s15
  // Predicated region
  $region2: #{deep_layer_forward.1} parent=0 // pred_check
    _
  $region3: #{deep_layer_forward.1} parent=0 // pred_check_branch
    %20 = sbr.rel (0) target = $region5
  $region4: #{deep_layer_forward.1} parent=0 // pred_region
    _
  $region5: #{deep_layer_forward.1} parent=0 // pred_fallthru
    _
  // Predicated region
  $region6: #{deep_layer_forward.1} parent=0 // pred_check
    _
  $region7: #{deep_layer_forward.1} parent=0 // pred_check_branch
    %22 = sbr.rel (0) target = $region9
  $region8: #{deep_layer_forward.1} parent=0 // pred_region
    _
  $region9: #{deep_layer_forward.1} parent=0 // pred_fallthru
    _
  // Predicated region
  $region10: #{deep_layer_forward.1} parent=0 // pred_check
    _
  $region11: #{deep_layer_forward.1} parent=0 // pred_check_branch
    %24 = sbr.rel (0) target = $region13
  $region12: #{deep_layer_forward.1} parent=0 // pred_region
    _
  $region13: #{deep_layer_forward.1} parent=0 // pred_fallthru
    _
  // Predicated region
  $region14: #{deep_layer_forward.1} parent=0 // pred_check
    _
  $region15: #{deep_layer_forward.1} parent=0 // pred_check_branch
    %26 = sbr.rel (0) target = $region17
  $region16: #{deep_layer_forward.1} parent=0 // pred_region
    _
  $region17: #{deep_layer_forward.1} parent=0 // pred_fallthru
    _
  // Predicated region
  $region18: #{deep_layer_forward.1} parent=0 // pred_check
    _
  $region19: #{deep_layer_forward.1} parent=0 // pred_check_branch
    %28 = sbr.rel (0) target = $region21
  $region20: #{deep_layer_forward.1} parent=0 // pred_region
    _
  $region21: #{deep_layer_forward.1} parent=0 // pred_fallthru
    _
  // Predicated region
  $region22: #{deep_layer_forward.1} parent=0 // pred_check
    _
  $region23: #{deep_layer_forward.1} parent=0 // pred_check_branch
    %30 = sbr.rel (0) target = $region25
  $region24: #{deep_layer_forward.1} parent=0 // pred_region
    _
  $region25: #{deep_layer_forward.1} parent=0 // pred_fallthru
    _
  // Predicated region
  $region26: #{deep_layer_forward.1} parent=0 // pred_check
    _
  $region27: #{deep_layer_forward.1} parent=0 // pred_check_branch
    %32 = sbr.rel (0) target = $region29
  $region28: #{deep_layer_forward.1} parent=0 // pred_region
    _
  $region29: #{deep_layer_forward.1} parent=0 // pred_fallthru
    _
  // Predicated region
  $region30: #{deep_layer_forward.1} parent=0 // pred_check
    _
  $region31: #{deep_layer_forward.1} parent=0 // pred_check_branch
    %34 = sbr.rel (0) target = $region33
  $region32: #{deep_layer_forward.1} parent=0 // pred_region
    _
  $region33: #{deep_layer_forward.1} parent=0 // pred_fallthru
    _
  // Predicated region
  $region34: #{deep_layer_forward.1} parent=0 // pred_check
    _
  $region35: #{deep_layer_forward.1} parent=0 // pred_check_branch
    %36 = sbr.rel (0) target = $region37
  $region36: #{deep_layer_forward.1} parent=0 // pred_region
    _
  $region37: #{deep_layer_forward.1} parent=0 // pred_fallthru
    _
  // Predicated region
  $region38: #{deep_layer_forward.1} parent=0 // pred_check
    _
  $region39: #{deep_layer_forward.1} parent=0 // pred_check_branch
    %38 = sbr.rel (0) target = $region41
  $region40: #{deep_layer_forward.1} parent=0 // pred_region
    _
  $region41: #{deep_layer_forward.1} parent=0 // pred_fallthru
    _
  // Predicated region
  $region42: #{deep_layer_forward.1} parent=0 // pred_check
    _
  $region43: #{deep_layer_forward.1} parent=0 // pred_check_branch
    %40 = sbr.rel (0) target = $region45
  $region44: #{deep_layer_forward.1} parent=0 // pred_region
    _
  $region45: #{deep_layer_forward.1} parent=0 // pred_fallthru
    _
  // Predicated region
  $region46: #{deep_layer_forward.1} parent=0 // pred_check
    _
  $region47: #{deep_layer_forward.1} parent=0 // pred_check_branch
    %42 = sbr.rel (0) target = $region49
  $region48: #{deep_layer_forward.1} parent=0 // pred_region
    _
  $region49: #{deep_layer_forward.1} parent=0 // pred_fallthru
    _
  // Predicated region
  $region50: #{deep_layer_forward.1} parent=0 // pred_check
    _
  $region51: #{deep_layer_forward.1} parent=0 // pred_check_branch
    %44 = sbr.rel (0) target = $region53
  $region52: #{deep_layer_forward.1} parent=0 // pred_region
    _
  $region53: #{deep_layer_forward.1} parent=0 // pred_fallthru
    _
  // Predicated region
  $region54: #{deep_layer_forward.1} parent=0 // pred_check
    _
  $region55: #{deep_layer_forward.1} parent=0 // pred_check_branch
    %46 = sbr.rel (0) target = $region57
  $region56: #{deep_layer_forward.1} parent=0 // pred_region
    _
  $region57: #{deep_layer_forward.1} parent=0 // pred_fallthru
    _
  %v48 = vld [vmem:[%s0] sm:$0xff]
  %v49 = vld [vmem:[%s0 + $0x8] sm:$0xff]
  %v50 = vld [vmem:[%s2] sm:$0x1]
  %v51 = vld [vmem:[%s3] sm:$0x1]
  %v52 = vld [vmem:[%s6] sm:$0xff]
  %v53 = vld [vmem:[%s6 + $0x8] sm:$0xff]
  %v54 = vld [vmem:[%s6 + $0x10] sm:$0xff]
  %v55 = vld [vmem:[%s6 + $0x18] sm:$0xff]
  %v56 = vld [vmem:[%s6 + $0x20] sm:$0xff]
  %v57 = vld [vmem:[%s6 + $0x28] sm:$0xff]
  %v58 = vld [vmem:[%s6 + $0x30] sm:$0xff]
  %v59 = vld [vmem:[%s6 + $0x38] sm:$0xff]
  %v60 = vld [vmem:[%s7] sm:$0xf]
  %vm61 = vcmask 523264
  %v63 = vsel %vm61, %v48, 0
  %v66 = vsel %vm61, %v49, 0
  %68 = vmatprep.subr.mxu0 0.0
  %69 = vmatpush1.msra.mxu0 0.0
  %70 = vmatprep.subr.mxu0 0.0
  %71 = vmatpush1.msra.mxu0 0.0
  %72 = vmatprep.subr.mxu0 0.0
  %73 = vmatpush1.msra.mxu0 0.0
  %74 = vmatprep.subr.mxu0 0.0
  %75 = vmatpush1.msra.mxu0 0.0
  %76 = vmatprep.subr.mxu0 0.0
  %77 = vmatpush1.msra.mxu0 0.0
  %78 = vmatprep.subr.mxu0 0.0
  %79 = vmatpush1.msra.mxu0 0.0
  %80 = vmatprep.subr.mxu0 0.0
  %81 = vmatpush1.msra.mxu0 0.0
  %82 = vmatprep.subr.mxu0 0.0
  %83 = vmatpush1.msra.mxu0 0.0
  %84 = vmatprep.subr.mxu0 0.0
  %85 = vmatpush1.msra.mxu0 %v59
  %86 = vmatprep.subr.mxu0 0.0
  %87 = vmatpush1.msra.mxu0 %v58
  %88 = vmatprep.subr.mxu0 0.0
  %89 = vmatpush1.msra.mxu0 %v57
  %90 = vmatprep.subr.mxu0 0.0
  %91 = vmatpush1.msra.mxu0 %v56
  %92 = vmatprep.subr.mxu0 0.0
  %93 = vmatpush1.msra.mxu0 %v55
  %94 = vmatprep.subr.mxu0 0.0
  %95 = vmatpush1.msra.mxu0 %v54
  %96 = vmatprep.subr.mxu0 0.0
  %97 = vmatpush1.msra.mxu0 %v53
  %98 = vmatprep.subr.mxu0 0.0
  %99 = vmatpush1.msra.mxu0 %v52
  %100 = vmatprep.subr.mxu0 0.0
  %101 = vmatpush2.msra.mxu0 0.0
  %102 = vmatprep.subr.mxu0 0.0
  %103 = vmatpush2.msra.mxu0 0.0
  %104 = vmatprep.subr.mxu0 0.0
  %105 = vmatpush2.msra.mxu0 0.0
  %106 = vmatprep.subr.mxu0 0.0
  %107 = vmatpush2.msra.mxu0 0.0
  %108 = vmatprep.subr.mxu0 0.0
  %109 = vmatpush2.msra.mxu0 0.0
  %110 = vmatprep.subr.mxu0 0.0
  %111 = vmatpush2.msra.mxu0 0.0
  %112 = vmatprep.subr.mxu0 0.0
  %113 = vmatpush2.msra.mxu0 0.0
  %114 = vmatprep.subr.mxu0 0.0
  %115 = vmatpush2.msra.mxu0 0.0
  %116 = vmatprep.subr.mxu0 0.0
  %117 = vmatpush2.msra.mxu0 0.0
  %118 = vmatprep.subr.mxu0 0.0
  %119 = vmatpush2.msra.mxu0 0.0
  %120 = vmatprep.subr.mxu0 0.0
  %121 = vmatpush2.msra.mxu0 0.0
  %122 = vmatprep.subr.mxu0 0.0
  %123 = vmatpush2.msra.mxu0 0.0
  %124 = vmatprep.subr.mxu0 0.0
  %125 = vmatpush2.msra.mxu0 0.0
  %126 = vmatprep.subr.mxu0 0.0
  %127 = vmatpush2.msra.mxu0 0.0
  %128 = vmatprep.subr.mxu0 0.0
  %129 = vmatpush2.msra.mxu0 0.0
  %130 = vmatprep.subr.mxu0 0.0
  %131 = vmatpush2.msra.mxu0 0.0
  %132 = vmatprep.mubr.f32.mxu0 0.0
  %133 = vmatmul.mubr.f32.gmra.mxu0 %v63
  %v134 = vpop.f32.mrf.mxu0
  %v135 = vadd.f32 0.0, %v134
  %v136 = vpop.f32.mrf.mxu0
  %137 = vmatprep.mubr.f32.mxu0 0.0
  %138 = vmatmul.mubr.f32.gmra.mxu0 %v66
  %v139 = vpop.f32.mrf.mxu0
  %v140 = vadd.f32 0.0, %v139
  %v141 = vpop.f32.mrf.mxu0
  %142 = vdwg.mxu0
  %vm143 = vcmask 31744
  %v144 = vsel %vm143, %v135, 0.0
  %v145 = vsel %vm143, %v140, 0.0
  %v146 = vadd.f32 %v144, %v145
  %v147 = vrot.slane %v146, 4
  %v148 = vadd.f32 %v146, %v147
  %v149 = vrot.slane %v148, 2
  %v150 = vadd.f32 %v148, %v149
  %v151 = vrot.slane %v150, 1
  %v152 = vadd.f32 %v150, %v151
  %v153 = vmul.f32 %v152, 0.00390625
  %v155 = vsel %vm143, %v153, 0
  %vm157 = vcmask 1043456
  %v159 = vsel %vm157, %v60, 0
  %161 = vmatprep.subr.mxu0 0.0
  %162 = vmatpush1.msra.mxu0 0.0
  %163 = vmatprep.subr.mxu0 0.0
  %164 = vmatpush1.msra.mxu0 0.0
  %165 = vmatprep.subr.mxu0 0.0
  %166 = vmatpush1.msra.mxu0 0.0
  %167 = vmatprep.subr.mxu0 0.0
  %168 = vmatpush1.msra.mxu0 0.0
  %169 = vmatprep.subr.mxu0 0.0
  %170 = vmatpush1.msra.mxu0 0.0
  %171 = vmatprep.subr.mxu0 0.0
  %172 = vmatpush1.msra.mxu0 0.0
  %173 = vmatprep.subr.mxu0 0.0
  %174 = vmatpush1.msra.mxu0 0.0
  %175 = vmatprep.subr.mxu0 0.0
  %176 = vmatpush1.msra.mxu0 0.0
  %177 = vmatprep.subr.mxu0 0.0
  %178 = vmatpush1.msra.mxu0 0.0
  %179 = vmatprep.subr.mxu0 0.0
  %180 = vmatpush1.msra.mxu0 0.0
  %181 = vmatprep.subr.mxu0 0.0
  %182 = vmatpush1.msra.mxu0 0.0
  %183 = vmatprep.subr.mxu0 0.0
  %184 = vmatpush1.msra.mxu0 0.0
  %185 = vmatprep.subr.mxu0 0.0
  %186 = vmatpush1.msra.mxu0 0.0
  %187 = vmatprep.subr.mxu0 0.0
  %188 = vmatpush1.msra.mxu0 0.0
  %189 = vmatprep.subr.mxu0 0.0
  %190 = vmatpush1.msra.mxu0 0.0
  %191 = vmatprep.subr.mxu0 0.0
  %192 = vmatpush1.msra.mxu0 %v159
  %193 = vmatprep.subr.mxu0 0.0
  %194 = vmatpush2.msra.mxu0 0.0
  %195 = vmatprep.subr.mxu0 0.0
  %196 = vmatpush2.msra.mxu0 0.0
  %197 = vmatprep.subr.mxu0 0.0
  %198 = vmatpush2.msra.mxu0 0.0
  %199 = vmatprep.subr.mxu0 0.0
  %200 = vmatpush2.msra.mxu0 0.0
  %201 = vmatprep.subr.mxu0 0.0
  %202 = vmatpush2.msra.mxu0 0.0
  %203 = vmatprep.subr.mxu0 0.0
  %204 = vmatpush2.msra.mxu0 0.0
  %205 = vmatprep.subr.mxu0 0.0
  %206 = vmatpush2.msra.mxu0 0.0
  %207 = vmatprep.subr.mxu0 0.0
  %208 = vmatpush2.msra.mxu0 0.0
  %209 = vmatprep.subr.mxu0 0.0
  %210 = vmatpush2.msra.mxu0 0.0
  %211 = vmatprep.subr.mxu0 0.0
  %212 = vmatpush2.msra.mxu0 0.0
  %213 = vmatprep.subr.mxu0 0.0
  %214 = vmatpush2.msra.mxu0 0.0
  %215 = vmatprep.subr.mxu0 0.0
  %216 = vmatpush2.msra.mxu0 0.0
  %217 = vmatprep.subr.mxu0 0.0
  %218 = vmatpush2.msra.mxu0 0.0
  %219 = vmatprep.subr.mxu0 0.0
  %220 = vmatpush2.msra.mxu0 0.0
  %221 = vmatprep.subr.mxu0 0.0
  %222 = vmatpush2.msra.mxu0 0.0
  %223 = vmatprep.subr.mxu0 0.0
  %224 = vmatpush2.msra.mxu0 0.0
  %225 = vmatprep.mubr.f32.mxu0 0.0
  %226 = vmatmul.mubr.f32.gmra.mxu0 %v155
  %v227 = vpop.f32.mrf.mxu0
  %v228 = vadd.f32 0.0, %v227
  %v229 = vpop.f32.mrf.mxu0
  %230 = vdwg.mxu0
  %v231 = vlaneseq
  %v232 = vshrl.u32 %v231, 7
  %v233 = vsub.s32 0, %v232
  %v234 = vrot.slane %v228, %v233
  %v235 = vsub.f32 %v48, %v234
  %v236 = vsub.f32 %v49, %v234
  %v237 = vmul.f32 %v235, %v235
  %v238 = vmul.f32 %v236, %v236
  %v240 = vsel %vm61, %v237, 0
  %v243 = vsel %vm61, %v238, 0
  %245 = vmatprep.subr.mxu0 0.0
  %246 = vmatpush1.msra.mxu0 0.0
  %247 = vmatprep.subr.mxu0 0.0
  %248 = vmatpush1.msra.mxu0 0.0
  %249 = vmatprep.subr.mxu0 0.0
  %250 = vmatpush1.msra.mxu0 0.0
  %251 = vmatprep.subr.mxu0 0.0
  %252 = vmatpush1.msra.mxu0 0.0
  %253 = vmatprep.subr.mxu0 0.0
  %254 = vmatpush1.msra.mxu0 0.0
  %255 = vmatprep.subr.mxu0 0.0
  %256 = vmatpush1.msra.mxu0 0.0
  %257 = vmatprep.subr.mxu0 0.0
  %258 = vmatpush1.msra.mxu0 0.0
  %259 = vmatprep.subr.mxu0 0.0
  %260 = vmatpush1.msra.mxu0 0.0
  %261 = vmatprep.subr.mxu0 0.0
  %262 = vmatpush1.msra.mxu0 %v59
  %263 = vmatprep.subr.mxu0 0.0
  %264 = vmatpush1.msra.mxu0 %v58
  %265 = vmatprep.subr.mxu0 0.0
  %266 = vmatpush1.msra.mxu0 %v57
  %267 = vmatprep.subr.mxu0 0.0
  %268 = vmatpush1.msra.mxu0 %v56
  %269 = vmatprep.subr.mxu0 0.0
  %270 = vmatpush1.msra.mxu0 %v55
  %271 = vmatprep.subr.mxu0 0.0
  %272 = vmatpush1.msra.mxu0 %v54
  %273 = vmatprep.subr.mxu0 0.0
  %274 = vmatpush1.msra.mxu0 %v53
  %275 = vmatprep.subr.mxu0 0.0
  %276 = vmatpush1.msra.mxu0 %v52
  %277 = vmatprep.subr.mxu0 0.0
  %278 = vmatpush2.msra.mxu0 0.0
  %279 = vmatprep.subr.mxu0 0.0
  %280 = vmatpush2.msra.mxu0 0.0
  %281 = vmatprep.subr.mxu0 0.0
  %282 = vmatpush2.msra.mxu0 0.0
  %283 = vmatprep.subr.mxu0 0.0
  %284 = vmatpush2.msra.mxu0 0.0
  %285 = vmatprep.subr.mxu0 0.0
  %286 = vmatpush2.msra.mxu0 0.0
  %287 = vmatprep.subr.mxu0 0.0
  %288 = vmatpush2.msra.mxu0 0.0
  %289 = vmatprep.subr.mxu0 0.0
  %290 = vmatpush2.msra.mxu0 0.0
  %291 = vmatprep.subr.mxu0 0.0
  %292 = vmatpush2.msra.mxu0 0.0
  %293 = vmatprep.subr.mxu0 0.0
  %294 = vmatpush2.msra.mxu0 0.0
  %295 = vmatprep.subr.mxu0 0.0
  %296 = vmatpush2.msra.mxu0 0.0
  %297 = vmatprep.subr.mxu0 0.0
  %298 = vmatpush2.msra.mxu0 0.0
  %299 = vmatprep.subr.mxu0 0.0
  %300 = vmatpush2.msra.mxu0 0.0
  %301 = vmatprep.subr.mxu0 0.0
  %302 = vmatpush2.msra.mxu0 0.0
  %303 = vmatprep.subr.mxu0 0.0
  %304 = vmatpush2.msra.mxu0 0.0
  %305 = vmatprep.subr.mxu0 0.0
  %306 = vmatpush2.msra.mxu0 0.0
  %307 = vmatprep.subr.mxu0 0.0
  %308 = vmatpush2.msra.mxu0 0.0
  %309 = vmatprep.mubr.f32.mxu0 0.0
  %310 = vmatmul.mubr.f32.gmra.mxu0 %v240
  %v311 = vpop.f32.mrf.mxu0
  %v312 = vadd.f32 0.0, %v311
  %v313 = vpop.f32.mrf.mxu0
  %314 = vmatprep.mubr.f32.mxu0 0.0
  %315 = vmatmul.mubr.f32.gmra.mxu0 %v243
  %v316 = vpop.f32.mrf.mxu0
  %v317 = vadd.f32 0.0, %v316
  %v318 = vpop.f32.mrf.mxu0
  %319 = vdwg.mxu0
  %v320 = vsel %vm143, %v312, 0.0
  %v321 = vsel %vm143, %v317, 0.0
  %v322 = vadd.f32 %v320, %v321
  %v323 = vrot.slane %v322, 4
  %v324 = vadd.f32 %v322, %v323
  %v325 = vrot.slane %v324, 2
  %v326 = vadd.f32 %v324, %v325
  %v327 = vrot.slane %v326, 1
  %v328 = vadd.f32 %v326, %v327
  %v329 = vmul.f32 %v328, 0.00390625
  %v330 = vadd.f32 %v329, 1e-05
  %v331 = vrsqrt.pop %v330
  %v333 = vsel %vm143, %v331, 0
  %335 = vmatprep.subr.mxu0 0.0
  %336 = vmatpush1.msra.mxu0 0.0
  %337 = vmatprep.subr.mxu0 0.0
  %338 = vmatpush1.msra.mxu0 0.0
  %339 = vmatprep.subr.mxu0 0.0
  %340 = vmatpush1.msra.mxu0 0.0
  %341 = vmatprep.subr.mxu0 0.0
  %342 = vmatpush1.msra.mxu0 0.0
  %343 = vmatprep.subr.mxu0 0.0
  %344 = vmatpush1.msra.mxu0 0.0
  %345 = vmatprep.subr.mxu0 0.0
  %346 = vmatpush1.msra.mxu0 0.0
  %347 = vmatprep.subr.mxu0 0.0
  %348 = vmatpush1.msra.mxu0 0.0
  %349 = vmatprep.subr.mxu0 0.0
  %350 = vmatpush1.msra.mxu0 0.0
  %351 = vmatprep.subr.mxu0 0.0
  %352 = vmatpush1.msra.mxu0 0.0
  %353 = vmatprep.subr.mxu0 0.0
  %354 = vmatpush1.msra.mxu0 0.0
  %355 = vmatprep.subr.mxu0 0.0
  %356 = vmatpush1.msra.mxu0 0.0
  %357 = vmatprep.subr.mxu0 0.0
  %358 = vmatpush1.msra.mxu0 0.0
  %359 = vmatprep.subr.mxu0 0.0
  %360 = vmatpush1.msra.mxu0 0.0
  %361 = vmatprep.subr.mxu0 0.0
  %362 = vmatpush1.msra.mxu0 0.0
  %363 = vmatprep.subr.mxu0 0.0
  %364 = vmatpush1.msra.mxu0 0.0
  %365 = vmatprep.subr.mxu0 0.0
  %366 = vmatpush1.msra.mxu0 %v159
  %367 = vmatprep.subr.mxu0 0.0
  %368 = vmatpush2.msra.mxu0 0.0
  %369 = vmatprep.subr.mxu0 0.0
  %370 = vmatpush2.msra.mxu0 0.0
  %371 = vmatprep.subr.mxu0 0.0
  %372 = vmatpush2.msra.mxu0 0.0
  %373 = vmatprep.subr.mxu0 0.0
  %374 = vmatpush2.msra.mxu0 0.0
  %375 = vmatprep.subr.mxu0 0.0
  %376 = vmatpush2.msra.mxu0 0.0
  %377 = vmatprep.subr.mxu0 0.0
  %378 = vmatpush2.msra.mxu0 0.0
  %379 = vmatprep.subr.mxu0 0.0
  %380 = vmatpush2.msra.mxu0 0.0
  %381 = vmatprep.subr.mxu0 0.0
  %382 = vmatpush2.msra.mxu0 0.0
  %383 = vmatprep.subr.mxu0 0.0
  %384 = vmatpush2.msra.mxu0 0.0
  %385 = vmatprep.subr.mxu0 0.0
  %386 = vmatpush2.msra.mxu0 0.0
  %387 = vmatprep.subr.mxu0 0.0
  %388 = vmatpush2.msra.mxu0 0.0
  %389 = vmatprep.subr.mxu0 0.0
  %390 = vmatpush2.msra.mxu0 0.0
  %391 = vmatprep.subr.mxu0 0.0
  %392 = vmatpush2.msra.mxu0 0.0
  %393 = vmatprep.subr.mxu0 0.0
  %394 = vmatpush2.msra.mxu0 0.0
  %395 = vmatprep.subr.mxu0 0.0
  %396 = vmatpush2.msra.mxu0 0.0
  %397 = vmatprep.subr.mxu0 0.0
  %398 = vmatpush2.msra.mxu0 0.0
  %399 = vmatprep.mubr.f32.mxu0 0.0
  %400 = vmatmul.mubr.f32.gmra.mxu0 %v333
  %v401 = vpop.f32.mrf.mxu0
  %v402 = vadd.f32 0.0, %v401
  %v403 = vpop.f32.mrf.mxu0
  %404 = vdwg.mxu0
  %v405 = vmul.f32 %v50, %v402
  %v407 = vlaneseq
  %v408 = vshrl.u32 %v407, 7
  %v409 = vsub.s32 0, %v408
  %v410 = vrot.slane %v405, %v409
  %v412 = vmul.f32 %v235, %v410
  %v413 = vmul.f32 %v236, %v410
  %v415 = vlaneseq
  %v416 = vshrl.u32 %v415, 7
  %v417 = vsub.s32 0, %v416
  %v418 = vrot.slane %v51, %v417
  %v420 = vadd.f32 %v412, %v418
  %v421 = vadd.f32 %v413, %v418
  %v422 = vadd.f32 %v420, 0.0
  %v423 = vadd.f32 %v421, 0.0
  %vm424 = vcmp.gt.f32.partialorder %v422, 0.5
  %vm425 = vcmp.gt.f32.partialorder %v423, 0.5
  %v426 = vsel %vm424, 1.0, 0.0
  %v427 = vsel %vm425, 1.0, 0.0
  %vm428 = vcmask 64512
  %429 = vst.msk [vmem:[#allocation2] sm:$0xff] %vm428, %v426
  %430 = vst.msk [vmem:[#allocation2 + $0x8] sm:$0xff] %vm428, %v427
  %v431 = vmul.f32 %v422, 0.2
  %v432 = vmul.f32 %v423, 0.2
  %v433 = vsub.f32 1.0, %v426
  %v434 = vsub.f32 1.0, %v427
  %v435 = vmul.f32 %v431, %v433
  %v436 = vmul.f32 %v432, %v434
  %439 = vrot.lane.b32.xlu0 %v420, 120
  %v440 = vpop.permute.xlu0 %439
  %441 = vrot.lane.b32.xlu0 %v421, 120
  %v442 = vpop.permute.xlu0 %441
  %v445 = vadd.f32 %v435, %v440
  %v446 = vadd.f32 %v436, %v442
  %vm447 = vcmp.gt.f32.partialorder %v445, 0.5
  %vm448 = vcmp.gt.f32.partialorder %v446, 0.5
  %v449 = vsel %vm447, 1.0, 0.0
  %v450 = vsel %vm448, 1.0, 0.0
  %453 = vrot.lane.b32.xlu0 %v449, 8
  %v454 = vpop.permute.xlu0 %453
  %455 = vrot.lane.b32.xlu0 %v450, 8
  %v456 = vpop.permute.xlu0 %455
  %vm459 = vcmask 130112
  %460 = vst.msk [vmem:[#allocation2] sm:$0xff] %vm459, %v454
  %461 = vst.msk [vmem:[#allocation2 + $0x8] sm:$0xff] %vm459, %v456
  %v462 = vmul.f32 %v445, 0.2
  %v463 = vmul.f32 %v446, 0.2
  %v464 = vsub.f32 1.0, %v449
  %v465 = vsub.f32 1.0, %v450
  %v466 = vmul.f32 %v462, %v464
  %v467 = vmul.f32 %v463, %v465
  %468 = vrot.lane.b32.xlu0 %v420, 112
  %v469 = vpop.permute.xlu0 %468
  %470 = vrot.lane.b32.xlu0 %v421, 112
  %v471 = vpop.permute.xlu0 %470
  %v474 = vadd.f32 %v466, %v469
  %v475 = vadd.f32 %v467, %v471
  %vm476 = vcmp.gt.f32.partialorder %v474, 0.5
  %vm477 = vcmp.gt.f32.partialorder %v475, 0.5
  %v478 = vsel %vm476, 1.0, 0.0
  %v479 = vsel %vm477, 1.0, 0.0
  %482 = vrot.lane.b32.xlu0 %v478, 16
  %v483 = vpop.permute.xlu0 %482
  %484 = vrot.lane.b32.xlu0 %v479, 16
  %v485 = vpop.permute.xlu0 %484
  %vm488 = vcmask 195712
  %489 = vst.msk [vmem:[#allocation2] sm:$0xff] %vm488, %v483
  %490 = vst.msk [vmem:[#allocation2 + $0x8] sm:$0xff] %vm488, %v485
  %v491 = vmul.f32 %v474, 0.2
  %v492 = vmul.f32 %v475, 0.2
  %v493 = vsub.f32 1.0, %v478
  %v494 = vsub.f32 1.0, %v479
  %v495 = vmul.f32 %v491, %v493
  %v496 = vmul.f32 %v492, %v494
  %497 = vrot.lane.b32.xlu0 %v420, 104
  %v498 = vpop.permute.xlu0 %497
  %499 = vrot.lane.b32.xlu0 %v421, 104
  %v500 = vpop.permute.xlu0 %499
  %v503 = vadd.f32 %v495, %v498
  %v504 = vadd.f32 %v496, %v500
  %vm505 = vcmp.gt.f32.partialorder %v503, 0.5
  %vm506 = vcmp.gt.f32.partialorder %v504, 0.5
  %v507 = vsel %vm505, 1.0, 0.0
  %v508 = vsel %vm506, 1.0, 0.0
  %511 = vrot.lane.b32.xlu0 %v507, 24
  %v512 = vpop.permute.xlu0 %511
  %513 = vrot.lane.b32.xlu0 %v508, 24
  %v514 = vpop.permute.xlu0 %513
  %vm517 = vcmask 261312
  %518 = vst.msk [vmem:[#allocation2] sm:$0xff] %vm517, %v512
  %519 = vst.msk [vmem:[#allocation2 + $0x8] sm:$0xff] %vm517, %v514
  %v520 = vmul.f32 %v503, 0.2
  %v521 = vmul.f32 %v504, 0.2
  %v522 = vsub.f32 1.0, %v507
  %v523 = vsub.f32 1.0, %v508
  %v524 = vmul.f32 %v520, %v522
  %v525 = vmul.f32 %v521, %v523
  %526 = vrot.lane.b32.xlu0 %v420, 96
  %v527 = vpop.permute.xlu0 %526
  %528 = vrot.lane.b32.xlu0 %v421, 96
  %v529 = vpop.permute.xlu0 %528
  %v532 = vadd.f32 %v524, %v527
  %v533 = vadd.f32 %v525, %v529
  %vm534 = vcmp.gt.f32.partialorder %v532, 0.5
  %vm535 = vcmp.gt.f32.partialorder %v533, 0.5
  %v536 = vsel %vm534, 1.0, 0.0
  %v537 = vsel %vm535, 1.0, 0.0
  %540 = vrot.lane.b32.xlu0 %v536, 32
  %v541 = vpop.permute.xlu0 %540
  %542 = vrot.lane.b32.xlu0 %v537, 32
  %v543 = vpop.permute.xlu0 %542
  %vm546 = vcmask 326912
  %547 = vst.msk [vmem:[#allocation2] sm:$0xff] %vm546, %v541
  %548 = vst.msk [vmem:[#allocation2 + $0x8] sm:$0xff] %vm546, %v543
  %v549 = vmul.f32 %v532, 0.2
  %v550 = vmul.f32 %v533, 0.2
  %v551 = vsub.f32 1.0, %v536
  %v552 = vsub.f32 1.0, %v537
  %v553 = vmul.f32 %v549, %v551
  %v554 = vmul.f32 %v550, %v552
  %555 = vrot.lane.b32.xlu0 %v420, 88
  %v556 = vpop.permute.xlu0 %555
  %557 = vrot.lane.b32.xlu0 %v421, 88
  %v558 = vpop.permute.xlu0 %557
  %v561 = vadd.f32 %v553, %v556
  %v562 = vadd.f32 %v554, %v558
  %vm563 = vcmp.gt.f32.partialorder %v561, 0.5
  %vm564 = vcmp.gt.f32.partialorder %v562, 0.5
  %v565 = vsel %vm563, 1.0, 0.0
  %v566 = vsel %vm564, 1.0, 0.0
  %569 = vrot.lane.b32.xlu0 %v565, 40
  %v570 = vpop.permute.xlu0 %569
  %571 = vrot.lane.b32.xlu0 %v566, 40
  %v572 = vpop.permute.xlu0 %571
  %vm575 = vcmask 392512
  %576 = vst.msk [vmem:[#allocation2] sm:$0xff] %vm575, %v570
  %577 = vst.msk [vmem:[#allocation2 + $0x8] sm:$0xff] %vm575, %v572
  %v578 = vmul.f32 %v561, 0.2
  %v579 = vmul.f32 %v562, 0.2
  %v580 = vsub.f32 1.0, %v565
  %v581 = vsub.f32 1.0, %v566
  %v582 = vmul.f32 %v578, %v580
  %v583 = vmul.f32 %v579, %v581
  %584 = vrot.lane.b32.xlu0 %v420, 80
  %v585 = vpop.permute.xlu0 %584
  %586 = vrot.lane.b32.xlu0 %v421, 80
  %v587 = vpop.permute.xlu0 %586
  %v590 = vadd.f32 %v582, %v585
  %v591 = vadd.f32 %v583, %v587
  %vm592 = vcmp.gt.f32.partialorder %v590, 0.5
  %vm593 = vcmp.gt.f32.partialorder %v591, 0.5
  %v594 = vsel %vm592, 1.0, 0.0
  %v595 = vsel %vm593, 1.0, 0.0
  %598 = vrot.lane.b32.xlu0 %v594, 48
  %v599 = vpop.permute.xlu0 %598
  %600 = vrot.lane.b32.xlu0 %v595, 48
  %v601 = vpop.permute.xlu0 %600
  %vm604 = vcmask 458112
  %605 = vst.msk [vmem:[#allocation2] sm:$0xff] %vm604, %v599
  %606 = vst.msk [vmem:[#allocation2 + $0x8] sm:$0xff] %vm604, %v601
  %v607 = vmul.f32 %v590, 0.2
  %v608 = vmul.f32 %v591, 0.2
  %v609 = vsub.f32 1.0, %v594
  %v610 = vsub.f32 1.0, %v595
  %v611 = vmul.f32 %v607, %v609
  %v612 = vmul.f32 %v608, %v610
  %613 = vrot.lane.b32.xlu0 %v420, 72
  %v614 = vpop.permute.xlu0 %613
  %615 = vrot.lane.b32.xlu0 %v421, 72
  %v616 = vpop.permute.xlu0 %615
  %v619 = vadd.f32 %v611, %v614
  %v620 = vadd.f32 %v612, %v616
  %vm621 = vcmp.gt.f32.partialorder %v619, 0.5
  %vm622 = vcmp.gt.f32.partialorder %v620, 0.5
  %v623 = vsel %vm621, 1.0, 0.0
  %v624 = vsel %vm622, 1.0, 0.0
  %627 = vrot.lane.b32.xlu0 %v623, 56
  %v628 = vpop.permute.xlu0 %627
  %629 = vrot.lane.b32.xlu0 %v624, 56
  %v630 = vpop.permute.xlu0 %629
  %vm633 = vcmask 523712
  %634 = vst.msk [vmem:[#allocation2] sm:$0xff] %vm633, %v628
  %635 = vst.msk [vmem:[#allocation2 + $0x8] sm:$0xff] %vm633, %v630
  %v636 = vld [vmem:[#allocation2] sm:$0xff]
  %v637 = vld [vmem:[#allocation2 + $0x8] sm:$0xff]
  %v638 = vpack.c.bf16 %v637, %v636
  %v639 = vld [vmem:[%s1] sm:$0xf]
  %v640 = vld [vmem:[%s1 + $0x4] sm:$0xf]
  %v643 = vunpack.c.l.b16 %v639
  %v644 = vunpack.c.l.b16 %v640
  %v645 = vpack.c.b16 %v644, %v643
  %vm646 = vcmask 130048
  %v648 = vsel %vm646, %v645, 0
  %650 = vmatprep.subr.bf16.mxu0 0
  %651 = vmatpush1.bf16.msra.mxu0 0
  %652 = vmatprep.subr.bf16.mxu0 0
  %653 = vmatpush1.bf16.msra.mxu0 0
  %654 = vmatprep.subr.bf16.mxu0 0
  %655 = vmatpush1.bf16.msra.mxu0 0
  %656 = vmatprep.subr.bf16.mxu0 0
  %657 = vmatpush1.bf16.msra.mxu0 0
  %658 = vmatprep.subr.bf16.mxu0 0
  %659 = vmatpush1.bf16.msra.mxu0 0
  %660 = vmatprep.subr.bf16.mxu0 0
  %661 = vmatpush1.bf16.msra.mxu0 0
  %662 = vmatprep.subr.bf16.mxu0 0
  %663 = vmatpush1.bf16.msra.mxu0 0
  %664 = vmatprep.subr.bf16.mxu0 0
  %665 = vmatpush1.bf16.msra.mxu0 %v638
  %666 = vmatprep.subr.bf16.mxu0 0
  %667 = vmatpush2.bf16.msra.mxu0 0
  %668 = vmatprep.subr.bf16.mxu0 0
  %669 = vmatpush2.bf16.msra.mxu0 0
  %670 = vmatprep.subr.bf16.mxu0 0
  %671 = vmatpush2.bf16.msra.mxu0 0
  %672 = vmatprep.subr.bf16.mxu0 0
  %673 = vmatpush2.bf16.msra.mxu0 0
  %674 = vmatprep.subr.bf16.mxu0 0
  %675 = vmatpush2.bf16.msra.mxu0 0
  %676 = vmatprep.subr.bf16.mxu0 0
  %677 = vmatpush2.bf16.msra.mxu0 0
  %678 = vmatprep.subr.bf16.mxu0 0
  %679 = vmatpush2.bf16.msra.mxu0 0
  %680 = vmatprep.subr.bf16.mxu0 0
  %681 = vmatpush2.bf16.msra.mxu0 0
  %682 = vmatprep.mubr.bf16.mxu0 0
  %683 = vmatmul.mubr.bf16.gmra.mxu0 %v648
  %v684 = vpop.f32.mrf.mxu0
  %v685 = vadd.f32 0.0, %v684
  %v686 = vpop.f32.mrf.mxu0
  %v687 = vpop.f32.mrf.mxu0
  %v688 = vadd.f32 0.0, %v687
  %v689 = vpop.f32.mrf.mxu0
  %690 = vdwg.mxu0
  %v691 = vpack.c.bf16 %v688, %v685
  %v692 = vld [vmem:[%s4] sm:$0xf]
  %v693 = vld [vmem:[%s4 + $0x4] sm:$0xf]
  %v694 = vld [vmem:[%s4 + $0x8] sm:$0xf]
  %v695 = vld [vmem:[%s4 + $0xc] sm:$0xf]
  %v696 = vld [vmem:[%s4 + $0x10] sm:$0xf]
  %v697 = vld [vmem:[%s4 + $0x14] sm:$0xf]
  %v698 = vld [vmem:[%s4 + $0x18] sm:$0xf]
  %v699 = vld [vmem:[%s4 + $0x1c] sm:$0xf]
  %v700 = vld [vmem:[%s4 + $0x20] sm:$0xf]
  %v701 = vld [vmem:[%s4 + $0x24] sm:$0xf]
  %v702 = vld [vmem:[%s4 + $0x28] sm:$0xf]
  %v703 = vld [vmem:[%s4 + $0x2c] sm:$0xf]
  %v704 = vld [vmem:[%s4 + $0x30] sm:$0xf]
  %v705 = vld [vmem:[%s4 + $0x34] sm:$0xf]
  %v706 = vld [vmem:[%s4 + $0x38] sm:$0xf]
  %v707 = vld [vmem:[%s4 + $0x3c] sm:$0xf]
  %v716 = vunpack.c.l.b16 %v700
  %v717 = vunpack.c.l.b16 %v701
  %v718 = vunpack.c.l.b16 %v702
  %v719 = vunpack.c.l.b16 %v703
  %v720 = vunpack.c.l.b16 %v704
  %v721 = vunpack.c.l.b16 %v705
  %v722 = vunpack.c.l.b16 %v706
  %v723 = vunpack.c.l.b16 %v707
  %v724 = vpack.c.b16 %v717, %v716
  %v725 = vpack.c.b16 %v719, %v718
  %v726 = vpack.c.b16 %v721, %v720
  %v727 = vpack.c.b16 %v723, %v722
  %v733 = vsel %vm61, %v691, 0
  %735 = vmatprep.subr.bf16.mxu0 0
  %736 = vmatpush1.bf16.msra.mxu0 0
  %737 = vmatprep.subr.bf16.mxu0 0
  %738 = vmatpush1.bf16.msra.mxu0 0
  %739 = vmatprep.subr.bf16.mxu0 0
  %740 = vmatpush1.bf16.msra.mxu0 0
  %741 = vmatprep.subr.bf16.mxu0 0
  %742 = vmatpush1.bf16.msra.mxu0 0
  %743 = vmatprep.subr.bf16.mxu0 0
  %744 = vmatpush1.bf16.msra.mxu0 %v727
  %745 = vmatprep.subr.bf16.mxu0 0
  %746 = vmatpush1.bf16.msra.mxu0 %v726
  %747 = vmatprep.subr.bf16.mxu0 0
  %748 = vmatpush1.bf16.msra.mxu0 %v725
  %749 = vmatprep.subr.bf16.mxu0 0
  %750 = vmatpush1.bf16.msra.mxu0 %v724
  %751 = vmatprep.subr.bf16.mxu0 0
  %752 = vmatpush2.bf16.msra.mxu0 0
  %753 = vmatprep.subr.bf16.mxu0 0
  %754 = vmatpush2.bf16.msra.mxu0 0
  %755 = vmatprep.subr.bf16.mxu0 0
  %756 = vmatpush2.bf16.msra.mxu0 0
  %757 = vmatprep.subr.bf16.mxu0 0
  %758 = vmatpush2.bf16.msra.mxu0 0
  %759 = vmatprep.subr.bf16.mxu0 0
  %760 = vmatpush2.bf16.msra.mxu0 0
  %761 = vmatprep.subr.bf16.mxu0 0
  %762 = vmatpush2.bf16.msra.mxu0 0
  %763 = vmatprep.subr.bf16.mxu0 0
  %764 = vmatpush2.bf16.msra.mxu0 0
  %765 = vmatprep.subr.bf16.mxu0 0
  %766 = vmatpush2.bf16.msra.mxu0 0
  %767 = vmatprep.mubr.bf16.mxu0 0
  %768 = vmatmul.mubr.bf16.gmra.mxu0 %v733
  %v769 = vpop.f32.mrf.mxu0
  %v770 = vadd.f32 0.0, %v769
  %v771 = vpop.f32.mrf.mxu0
  %v772 = vpop.f32.mrf.mxu0
  %v773 = vadd.f32 0.0, %v772
  %v774 = vpop.f32.mrf.mxu0
  %775 = vdwg.mxu0
  %v784 = vunpack.c.l.b16 %v692
  %v785 = vunpack.c.l.b16 %v693
  %v786 = vunpack.c.l.b16 %v694
  %v787 = vunpack.c.l.b16 %v695
  %v788 = vunpack.c.l.b16 %v696
  %v789 = vunpack.c.l.b16 %v697
  %v790 = vunpack.c.l.b16 %v698
  %v791 = vunpack.c.l.b16 %v699
  %v792 = vpack.c.b16 %v785, %v784
  %v793 = vpack.c.b16 %v787, %v786
  %v794 = vpack.c.b16 %v789, %v788
  %v795 = vpack.c.b16 %v791, %v790
  %v801 = vsel %vm61, %v638, 0
  %803 = vmatprep.subr.bf16.mxu0 0
  %804 = vmatpush1.bf16.msra.mxu0 0
  %805 = vmatprep.subr.bf16.mxu0 0
  %806 = vmatpush1.bf16.msra.mxu0 0
  %807 = vmatprep.subr.bf16.mxu0 0
  %808 = vmatpush1.bf16.msra.mxu0 0
  %809 = vmatprep.subr.bf16.mxu0 0
  %810 = vmatpush1.bf16.msra.mxu0 0
  %811 = vmatprep.subr.bf16.mxu0 0
  %812 = vmatpush1.bf16.msra.mxu0 %v795
  %813 = vmatprep.subr.bf16.mxu0 0
  %814 = vmatpush1.bf16.msra.mxu0 %v794
  %815 = vmatprep.subr.bf16.mxu0 0
  %816 = vmatpush1.bf16.msra.mxu0 %v793
  %817 = vmatprep.subr.bf16.mxu0 0
  %818 = vmatpush1.bf16.msra.mxu0 %v792
  %819 = vmatprep.subr.bf16.mxu0 0
  %820 = vmatpush2.bf16.msra.mxu0 0
  %821 = vmatprep.subr.bf16.mxu0 0
  %822 = vmatpush2.bf16.msra.mxu0 0
  %823 = vmatprep.subr.bf16.mxu0 0
  %824 = vmatpush2.bf16.msra.mxu0 0
  %825 = vmatprep.subr.bf16.mxu0 0
  %826 = vmatpush2.bf16.msra.mxu0 0
  %827 = vmatprep.subr.bf16.mxu0 0
  %828 = vmatpush2.bf16.msra.mxu0 0
  %829 = vmatprep.subr.bf16.mxu0 0
  %830 = vmatpush2.bf16.msra.mxu0 0
  %831 = vmatprep.subr.bf16.mxu0 0
  %832 = vmatpush2.bf16.msra.mxu0 0
  %833 = vmatprep.subr.bf16.mxu0 0
  %834 = vmatpush2.bf16.msra.mxu0 0
  %835 = vmatprep.mubr.bf16.mxu0 0
  %836 = vmatmul.mubr.bf16.gmra.mxu0 %v801
  %v837 = vpop.f32.mrf.mxu0
  %v838 = vadd.f32 %v770, %v837
  %v839 = vpop.f32.mrf.mxu0
  %v840 = vpop.f32.mrf.mxu0
  %v841 = vadd.f32 %v773, %v840
  %v842 = vpop.f32.mrf.mxu0
  %843 = vdwg.mxu0
  %v844 = vld [vmem:[%s5] sm:$0x1]
  %v846 = vlaneseq
  %v847 = vshrl.u32 %v846, 7
  %v848 = vsub.s32 0, %v847
  %v849 = vrot.slane %v844, %v848
  %v851 = vadd.f32 %v838, %v849
  %v852 = vadd.f32 %v841, %v849
  %v853 = vld [vmem:[%s8] sm:$0x1]
  %v854 = vld [vmem:[%s9] sm:$0x1]
  %v855 = vld [vmem:[%s12] sm:$0xff]
  %v856 = vld [vmem:[%s12 + $0x8] sm:$0xff]
  %v857 = vld [vmem:[%s12 + $0x10] sm:$0xff]
  %v858 = vld [vmem:[%s12 + $0x18] sm:$0xff]
  %v859 = vld [vmem:[%s12 + $0x20] sm:$0xff]
  %v860 = vld [vmem:[%s12 + $0x28] sm:$0xff]
  %v861 = vld [vmem:[%s12 + $0x30] sm:$0xff]
  %v862 = vld [vmem:[%s12 + $0x38] sm:$0xff]
  %v863 = vld [vmem:[%s12 + $0x40] sm:$0xff]
  %v864 = vld [vmem:[%s12 + $0x48] sm:$0xff]
  %v865 = vld [vmem:[%s12 + $0x50] sm:$0xff]
  %v866 = vld [vmem:[%s12 + $0x58] sm:$0xff]
  %v867 = vld [vmem:[%s12 + $0x60] sm:$0xff]
  %v868 = vld [vmem:[%s12 + $0x68] sm:$0xff]
  %v869 = vld [vmem:[%s12 + $0x70] sm:$0xff]
  %v870 = vld [vmem:[%s12 + $0x78] sm:$0xff]
  %v871 = vld [vmem:[%s13] sm:$0xff]
  %872 = vmatprep.subr.mxu0 0.0
  %873 = vmatpush1.msra.mxu0 %v870
  %874 = vmatprep.subr.mxu0 0.0
  %875 = vmatpush1.msra.mxu0 %v869
  %876 = vmatprep.subr.mxu0 0.0
  %877 = vmatpush1.msra.mxu0 %v868
  %878 = vmatprep.subr.mxu0 0.0
  %879 = vmatpush1.msra.mxu0 %v867
  %880 = vmatprep.subr.mxu0 0.0
  %881 = vmatpush1.msra.mxu0 %v866
  %882 = vmatprep.subr.mxu0 0.0
  %883 = vmatpush1.msra.mxu0 %v865
  %884 = vmatprep.subr.mxu0 0.0
  %885 = vmatpush1.msra.mxu0 %v864
  %886 = vmatprep.subr.mxu0 0.0
  %887 = vmatpush1.msra.mxu0 %v863
  %888 = vmatprep.subr.mxu0 0.0
  %889 = vmatpush1.msra.mxu0 %v862
  %890 = vmatprep.subr.mxu0 0.0
  %891 = vmatpush1.msra.mxu0 %v861
  %892 = vmatprep.subr.mxu0 0.0
  %893 = vmatpush1.msra.mxu0 %v860
  %894 = vmatprep.subr.mxu0 0.0
  %895 = vmatpush1.msra.mxu0 %v859
  %896 = vmatprep.subr.mxu0 0.0
  %897 = vmatpush1.msra.mxu0 %v858
  %898 = vmatprep.subr.mxu0 0.0
  %899 = vmatpush1.msra.mxu0 %v857
  %900 = vmatprep.subr.mxu0 0.0
  %901 = vmatpush1.msra.mxu0 %v856
  %902 = vmatprep.subr.mxu0 0.0
  %903 = vmatpush1.msra.mxu0 %v855
  %904 = vmatprep.subr.mxu0 0.0
  %905 = vmatpush2.msra.mxu0 0.0
  %906 = vmatprep.subr.mxu0 0.0
  %907 = vmatpush2.msra.mxu0 0.0
  %908 = vmatprep.subr.mxu0 0.0
  %909 = vmatpush2.msra.mxu0 0.0
  %910 = vmatprep.subr.mxu0 0.0
  %911 = vmatpush2.msra.mxu0 0.0
  %912 = vmatprep.subr.mxu0 0.0
  %913 = vmatpush2.msra.mxu0 0.0
  %914 = vmatprep.subr.mxu0 0.0
  %915 = vmatpush2.msra.mxu0 0.0
  %916 = vmatprep.subr.mxu0 0.0
  %917 = vmatpush2.msra.mxu0 0.0
  %918 = vmatprep.subr.mxu0 0.0
  %919 = vmatpush2.msra.mxu0 0.0
  %920 = vmatprep.subr.mxu0 0.0
  %921 = vmatpush2.msra.mxu0 0.0
  %922 = vmatprep.subr.mxu0 0.0
  %923 = vmatpush2.msra.mxu0 0.0
  %924 = vmatprep.subr.mxu0 0.0
  %925 = vmatpush2.msra.mxu0 0.0
  %926 = vmatprep.subr.mxu0 0.0
  %927 = vmatpush2.msra.mxu0 0.0
  %928 = vmatprep.subr.mxu0 0.0
  %929 = vmatpush2.msra.mxu0 0.0
  %930 = vmatprep.subr.mxu0 0.0
  %931 = vmatpush2.msra.mxu0 0.0
  %932 = vmatprep.subr.mxu0 0.0
  %933 = vmatpush2.msra.mxu0 0.0
  %934 = vmatprep.subr.mxu0 0.0
  %935 = vmatpush2.msra.mxu0 0.0
  %936 = vmatprep.mubr.f32.mxu0 0.0
  %937 = vmatmul.mubr.f32.gmra.mxu0 %v851
  %v938 = vpop.f32.mrf.mxu0
  %v939 = vadd.f32 0.0, %v938
  %v940 = vpop.f32.mrf.mxu0
  %941 = vmatprep.mubr.f32.mxu0 0.0
  %942 = vmatmul.mubr.f32.gmra.mxu0 %v852
  %v943 = vpop.f32.mrf.mxu0
  %v944 = vadd.f32 0.0, %v943
  %v945 = vpop.f32.mrf.mxu0
  %946 = vdwg.mxu0
  %v947 = vsel %vm428, %v939, 0.0
  %v948 = vsel %vm428, %v944, 0.0
  %v949 = vadd.f32 %v947, %v948
  %v950 = vrot.slane %v949, 4
  %v951 = vadd.f32 %v949, %v950
  %v952 = vrot.slane %v951, 2
  %v953 = vadd.f32 %v951, %v952
  %v954 = vrot.slane %v953, 1
  %v955 = vadd.f32 %v953, %v954
  %v956 = vmul.f32 %v955, 0.00390625
  %v958 = vsel %vm428, %v956, 0
  %960 = vmatprep.subr.mxu0 0.0
  %961 = vmatpush1.msra.mxu0 0.0
  %962 = vmatprep.subr.mxu0 0.0
  %963 = vmatpush1.msra.mxu0 0.0
  %964 = vmatprep.subr.mxu0 0.0
  %965 = vmatpush1.msra.mxu0 0.0
  %966 = vmatprep.subr.mxu0 0.0
  %967 = vmatpush1.msra.mxu0 0.0
  %968 = vmatprep.subr.mxu0 0.0
  %969 = vmatpush1.msra.mxu0 0.0
  %970 = vmatprep.subr.mxu0 0.0
  %971 = vmatpush1.msra.mxu0 0.0
  %972 = vmatprep.subr.mxu0 0.0
  %973 = vmatpush1.msra.mxu0 0.0
  %974 = vmatprep.subr.mxu0 0.0
  %975 = vmatpush1.msra.mxu0 0.0
  %976 = vmatprep.subr.mxu0 0.0
  %977 = vmatpush1.msra.mxu0 0.0
  %978 = vmatprep.subr.mxu0 0.0
  %979 = vmatpush1.msra.mxu0 0.0
  %980 = vmatprep.subr.mxu0 0.0
  %981 = vmatpush1.msra.mxu0 0.0
  %982 = vmatprep.subr.mxu0 0.0
  %983 = vmatpush1.msra.mxu0 0.0
  %984 = vmatprep.subr.mxu0 0.0
  %985 = vmatpush1.msra.mxu0 0.0
  %986 = vmatprep.subr.mxu0 0.0
  %987 = vmatpush1.msra.mxu0 0.0
  %988 = vmatprep.subr.mxu0 0.0
  %989 = vmatpush1.msra.mxu0 0.0
  %990 = vmatprep.subr.mxu0 0.0
  %991 = vmatpush1.msra.mxu0 %v871
  %992 = vmatprep.subr.mxu0 0.0
  %993 = vmatpush2.msra.mxu0 0.0
  %994 = vmatprep.subr.mxu0 0.0
  %995 = vmatpush2.msra.mxu0 0.0
  %996 = vmatprep.subr.mxu0 0.0
  %997 = vmatpush2.msra.mxu0 0.0
  %998 = vmatprep.subr.mxu0 0.0
  %999 = vmatpush2.msra.mxu0 0.0
  %1000 = vmatprep.subr.mxu0 0.0
  %1001 = vmatpush2.msra.mxu0 0.0
  %1002 = vmatprep.subr.mxu0 0.0
  %1003 = vmatpush2.msra.mxu0 0.0
  %1004 = vmatprep.subr.mxu0 0.0
  %1005 = vmatpush2.msra.mxu0 0.0
  %1006 = vmatprep.subr.mxu0 0.0
  %1007 = vmatpush2.msra.mxu0 0.0
  %1008 = vmatprep.subr.mxu0 0.0
  %1009 = vmatpush2.msra.mxu0 0.0
  %1010 = vmatprep.subr.mxu0 0.0
  %1011 = vmatpush2.msra.mxu0 0.0
  %1012 = vmatprep.subr.mxu0 0.0
  %1013 = vmatpush2.msra.mxu0 0.0
  %1014 = vmatprep.subr.mxu0 0.0
  %1015 = vmatpush2.msra.mxu0 0.0
  %1016 = vmatprep.subr.mxu0 0.0
  %1017 = vmatpush2.msra.mxu0 0.0
  %1018 = vmatprep.subr.mxu0 0.0
  %1019 = vmatpush2.msra.mxu0 0.0
  %1020 = vmatprep.subr.mxu0 0.0
  %1021 = vmatpush2.msra.mxu0 0.0
  %1022 = vmatprep.subr.mxu0 0.0
  %1023 = vmatpush2.msra.mxu0 0.0
  %1024 = vmatprep.mubr.f32.mxu0 0.0
  %1025 = vmatmul.mubr.f32.gmra.mxu0 %v958
  %v1026 = vpop.f32.mrf.mxu0
  %v1027 = vadd.f32 0.0, %v1026
  %v1028 = vpop.f32.mrf.mxu0
  %1029 = vdwg.mxu0
  %v1030 = vlaneseq
  %v1031 = vshrl.u32 %v1030, 7
  %v1032 = vsub.s32 0, %v1031
  %v1033 = vrot.slane %v1027, %v1032
  %v1034 = vsub.f32 %v851, %v1033
  %v1035 = vsub.f32 %v852, %v1033
  %v1036 = vmul.f32 %v1034, %v1034
  %v1037 = vmul.f32 %v1035, %v1035
  %1038 = vmatprep.subr.mxu0 0.0
  %1039 = vmatpush1.msra.mxu0 %v870
  %1040 = vmatprep.subr.mxu0 0.0
  %1041 = vmatpush1.msra.mxu0 %v869
  %1042 = vmatprep.subr.mxu0 0.0
  %1043 = vmatpush1.msra.mxu0 %v868
  %1044 = vmatprep.subr.mxu0 0.0
  %1045 = vmatpush1.msra.mxu0 %v867
  %1046 = vmatprep.subr.mxu0 0.0
  %1047 = vmatpush1.msra.mxu0 %v866
  %1048 = vmatprep.subr.mxu0 0.0
  %1049 = vmatpush1.msra.mxu0 %v865
  %1050 = vmatprep.subr.mxu0 0.0
  %1051 = vmatpush1.msra.mxu0 %v864
  %1052 = vmatprep.subr.mxu0 0.0
  %1053 = vmatpush1.msra.mxu0 %v863
  %1054 = vmatprep.subr.mxu0 0.0
  %1055 = vmatpush1.msra.mxu0 %v862
  %1056 = vmatprep.subr.mxu0 0.0
  %1057 = vmatpush1.msra.mxu0 %v861
  %1058 = vmatprep.subr.mxu0 0.0
  %1059 = vmatpush1.msra.mxu0 %v860
  %1060 = vmatprep.subr.mxu0 0.0
  %1061 = vmatpush1.msra.mxu0 %v859
  %1062 = vmatprep.subr.mxu0 0.0
  %1063 = vmatpush1.msra.mxu0 %v858
  %1064 = vmatprep.subr.mxu0 0.0
  %1065 = vmatpush1.msra.mxu0 %v857
  %1066 = vmatprep.subr.mxu0 0.0
  %1067 = vmatpush1.msra.mxu0 %v856
  %1068 = vmatprep.subr.mxu0 0.0
  %1069 = vmatpush1.msra.mxu0 %v855
  %1070 = vmatprep.subr.mxu0 0.0
  %1071 = vmatpush2.msra.mxu0 0.0
  %1072 = vmatprep.subr.mxu0 0.0
  %1073 = vmatpush2.msra.mxu0 0.0
  %1074 = vmatprep.subr.mxu0 0.0
  %1075 = vmatpush2.msra.mxu0 0.0
  %1076 = vmatprep.subr.mxu0 0.0
  %1077 = vmatpush2.msra.mxu0 0.0
  %1078 = vmatprep.subr.mxu0 0.0
  %1079 = vmatpush2.msra.mxu0 0.0
  %1080 = vmatprep.subr.mxu0 0.0
  %1081 = vmatpush2.msra.mxu0 0.0
  %1082 = vmatprep.subr.mxu0 0.0
  %1083 = vmatpush2.msra.mxu0 0.0
  %1084 = vmatprep.subr.mxu0 0.0
  %1085 = vmatpush2.msra.mxu0 0.0
  %1086 = vmatprep.subr.mxu0 0.0
  %1087 = vmatpush2.msra.mxu0 0.0
  %1088 = vmatprep.subr.mxu0 0.0
  %1089 = vmatpush2.msra.mxu0 0.0
  %1090 = vmatprep.subr.mxu0 0.0
  %1091 = vmatpush2.msra.mxu0 0.0
  %1092 = vmatprep.subr.mxu0 0.0
  %1093 = vmatpush2.msra.mxu0 0.0
  %1094 = vmatprep.subr.mxu0 0.0
  %1095 = vmatpush2.msra.mxu0 0.0
  %1096 = vmatprep.subr.mxu0 0.0
  %1097 = vmatpush2.msra.mxu0 0.0
  %1098 = vmatprep.subr.mxu0 0.0
  %1099 = vmatpush2.msra.mxu0 0.0
  %1100 = vmatprep.subr.mxu0 0.0
  %1101 = vmatpush2.msra.mxu0 0.0
  %1102 = vmatprep.mubr.f32.mxu0 0.0
  %1103 = vmatmul.mubr.f32.gmra.mxu0 %v1036
  %v1104 = vpop.f32.mrf.mxu0
  %v1105 = vadd.f32 0.0, %v1104
  %v1106 = vpop.f32.mrf.mxu0
  %1107 = vmatprep.mubr.f32.mxu0 0.0
  %1108 = vmatmul.mubr.f32.gmra.mxu0 %v1037
  %v1109 = vpop.f32.mrf.mxu0
  %v1110 = vadd.f32 0.0, %v1109
  %v1111 = vpop.f32.mrf.mxu0
  %1112 = vdwg.mxu0
  %v1113 = vsel %vm428, %v1105, 0.0
  %v1114 = vsel %vm428, %v1110, 0.0
  %v1115 = vadd.f32 %v1113, %v1114
  %v1116 = vrot.slane %v1115, 4
  %v1117 = vadd.f32 %v1115, %v1116
  %v1118 = vrot.slane %v1117, 2
  %v1119 = vadd.f32 %v1117, %v1118
  %v1120 = vrot.slane %v1119, 1
  %v1121 = vadd.f32 %v1119, %v1120
  %v1122 = vmul.f32 %v1121, 0.00390625
  %v1123 = vadd.f32 %v1122, 1e-05
  %v1124 = vrsqrt.pop %v1123
  %v1126 = vsel %vm428, %v1124, 0
  %1128 = vmatprep.subr.mxu0 0.0
  %1129 = vmatpush1.msra.mxu0 0.0
  %1130 = vmatprep.subr.mxu0 0.0
  %1131 = vmatpush1.msra.mxu0 0.0
  %1132 = vmatprep.subr.mxu0 0.0
  %1133 = vmatpush1.msra.mxu0 0.0
  %1134 = vmatprep.subr.mxu0 0.0
  %1135 = vmatpush1.msra.mxu0 0.0
  %1136 = vmatprep.subr.mxu0 0.0
  %1137 = vmatpush1.msra.mxu0 0.0
  %1138 = vmatprep.subr.mxu0 0.0
  %1139 = vmatpush1.msra.mxu0 0.0
  %1140 = vmatprep.subr.mxu0 0.0
  %1141 = vmatpush1.msra.mxu0 0.0
  %1142 = vmatprep.subr.mxu0 0.0
  %1143 = vmatpush1.msra.mxu0 0.0
  %1144 = vmatprep.subr.mxu0 0.0
  %1145 = vmatpush1.msra.mxu0 0.0
  %1146 = vmatprep.subr.mxu0 0.0
  %1147 = vmatpush1.msra.mxu0 0.0
  %1148 = vmatprep.subr.mxu0 0.0
  %1149 = vmatpush1.msra.mxu0 0.0
  %1150 = vmatprep.subr.mxu0 0.0
  %1151 = vmatpush1.msra.mxu0 0.0
  %1152 = vmatprep.subr.mxu0 0.0
  %1153 = vmatpush1.msra.mxu0 0.0
  %1154 = vmatprep.subr.mxu0 0.0
  %1155 = vmatpush1.msra.mxu0 0.0
  %1156 = vmatprep.subr.mxu0 0.0
  %1157 = vmatpush1.msra.mxu0 0.0
  %1158 = vmatprep.subr.mxu0 0.0
  %1159 = vmatpush1.msra.mxu0 %v871
  %1160 = vmatprep.subr.mxu0 0.0
  %1161 = vmatpush2.msra.mxu0 0.0
  %1162 = vmatprep.subr.mxu0 0.0
  %1163 = vmatpush2.msra.mxu0 0.0
  %1164 = vmatprep.subr.mxu0 0.0
  %1165 = vmatpush2.msra.mxu0 0.0
  %1166 = vmatprep.subr.mxu0 0.0
  %1167 = vmatpush2.msra.mxu0 0.0
  %1168 = vmatprep.subr.mxu0 0.0
  %1169 = vmatpush2.msra.mxu0 0.0
  %1170 = vmatprep.subr.mxu0 0.0
  %1171 = vmatpush2.msra.mxu0 0.0
  %1172 = vmatprep.subr.mxu0 0.0
  %1173 = vmatpush2.msra.mxu0 0.0
  %1174 = vmatprep.subr.mxu0 0.0
  %1175 = vmatpush2.msra.mxu0 0.0
  %1176 = vmatprep.subr.mxu0 0.0
  %1177 = vmatpush2.msra.mxu0 0.0
  %1178 = vmatprep.subr.mxu0 0.0
  %1179 = vmatpush2.msra.mxu0 0.0
  %1180 = vmatprep.subr.mxu0 0.0
  %1181 = vmatpush2.msra.mxu0 0.0
  %1182 = vmatprep.subr.mxu0 0.0
  %1183 = vmatpush2.msra.mxu0 0.0
  %1184 = vmatprep.subr.mxu0 0.0
  %1185 = vmatpush2.msra.mxu0 0.0
  %1186 = vmatprep.subr.mxu0 0.0
  %1187 = vmatpush2.msra.mxu0 0.0
  %1188 = vmatprep.subr.mxu0 0.0
  %1189 = vmatpush2.msra.mxu0 0.0
  %1190 = vmatprep.subr.mxu0 0.0
  %1191 = vmatpush2.msra.mxu0 0.0
  %1192 = vmatprep.mubr.f32.mxu0 0.0
  %1193 = vmatmul.mubr.f32.gmra.mxu0 %v1126
  %v1194 = vpop.f32.mrf.mxu0
  %v1195 = vadd.f32 0.0, %v1194
  %v1196 = vpop.f32.mrf.mxu0
  %1197 = vdwg.mxu0
  %v1198 = vmul.f32 %v853, %v1195
  %v1200 = vlaneseq
  %v1201 = vshrl.u32 %v1200, 7
  %v1202 = vsub.s32 0, %v1201
  %v1203 = vrot.slane %v1198, %v1202
  %v1205 = vmul.f32 %v1034, %v1203
  %v1206 = vmul.f32 %v1035, %v1203
  %v1208 = vlaneseq
  %v1209 = vshrl.u32 %v1208, 7
  %v1210 = vsub.s32 0, %v1209
  %v1211 = vrot.slane %v854, %v1210
  %v1213 = vadd.f32 %v1205, %v1211
  %v1214 = vadd.f32 %v1206, %v1211
  %v1215 = vadd.f32 %v1213, 0.0
  %v1216 = vadd.f32 %v1214, 0.0
  %vm1217 = vcmp.gt.f32.partialorder %v1215, 0.5
  %vm1218 = vcmp.gt.f32.partialorder %v1216, 0.5
  %v1219 = vsel %vm1217, 1.0, 0.0
  %v1220 = vsel %vm1218, 1.0, 0.0
  %1221 = vst.msk [vmem:[#allocation3] sm:$0xff] %vm646, %v1219
  %1222 = vst.msk [vmem:[#allocation3 + $0x8] sm:$0xff] %vm646, %v1220
  %v1223 = vmul.f32 %v1215, 0.2
  %v1224 = vmul.f32 %v1216, 0.2
  %v1225 = vsub.f32 1.0, %v1219
  %v1226 = vsub.f32 1.0, %v1220
  %v1227 = vmul.f32 %v1223, %v1225
  %v1228 = vmul.f32 %v1224, %v1226
  %1231 = vrot.lane.b32.xlu0 %v1213, 112
  %v1232 = vpop.permute.xlu0 %1231
  %1233 = vrot.lane.b32.xlu0 %v1214, 112
  %v1234 = vpop.permute.xlu0 %1233
  %v1237 = vadd.f32 %v1227, %v1232
  %v1238 = vadd.f32 %v1228, %v1234
  %vm1239 = vcmp.gt.f32.partialorder %v1237, 0.5
  %vm1240 = vcmp.gt.f32.partialorder %v1238, 0.5
  %v1241 = vsel %vm1239, 1.0, 0.0
  %v1242 = vsel %vm1240, 1.0, 0.0
  %1245 = vrot.lane.b32.xlu0 %v1241, 16
  %v1246 = vpop.permute.xlu0 %1245
  %1247 = vrot.lane.b32.xlu0 %v1242, 16
  %v1248 = vpop.permute.xlu0 %1247
  %vm1251 = vcmask 261248
  %1252 = vst.msk [vmem:[#allocation3] sm:$0xff] %vm1251, %v1246
  %1253 = vst.msk [vmem:[#allocation3 + $0x8] sm:$0xff] %vm1251, %v1248
  %v1254 = vmul.f32 %v1237, 0.2
  %v1255 = vmul.f32 %v1238, 0.2
  %v1256 = vsub.f32 1.0, %v1241
  %v1257 = vsub.f32 1.0, %v1242
  %v1258 = vmul.f32 %v1254, %v1256
  %v1259 = vmul.f32 %v1255, %v1257
  %1260 = vrot.lane.b32.xlu0 %v1213, 96
  %v1261 = vpop.permute.xlu0 %1260
  %1262 = vrot.lane.b32.xlu0 %v1214, 96
  %v1263 = vpop.permute.xlu0 %1262
  %v1266 = vadd.f32 %v1258, %v1261
  %v1267 = vadd.f32 %v1259, %v1263
  %vm1268 = vcmp.gt.f32.partialorder %v1266, 0.5
  %vm1269 = vcmp.gt.f32.partialorder %v1267, 0.5
  %v1270 = vsel %vm1268, 1.0, 0.0
  %v1271 = vsel %vm1269, 1.0, 0.0
  %1274 = vrot.lane.b32.xlu0 %v1270, 32
  %v1275 = vpop.permute.xlu0 %1274
  %1276 = vrot.lane.b32.xlu0 %v1271, 32
  %v1277 = vpop.permute.xlu0 %1276
  %vm1280 = vcmask 392448
  %1281 = vst.msk [vmem:[#allocation3] sm:$0xff] %vm1280, %v1275
  %1282 = vst.msk [vmem:[#allocation3 + $0x8] sm:$0xff] %vm1280, %v1277
  %v1283 = vmul.f32 %v1266, 0.2
  %v1284 = vmul.f32 %v1267, 0.2
  %v1285 = vsub.f32 1.0, %v1270
  %v1286 = vsub.f32 1.0, %v1271
  %v1287 = vmul.f32 %v1283, %v1285
  %v1288 = vmul.f32 %v1284, %v1286
  %1289 = vrot.lane.b32.xlu0 %v1213, 80
  %v1290 = vpop.permute.xlu0 %1289
  %1291 = vrot.lane.b32.xlu0 %v1214, 80
  %v1292 = vpop.permute.xlu0 %1291
  %v1295 = vadd.f32 %v1287, %v1290
  %v1296 = vadd.f32 %v1288, %v1292
  %vm1297 = vcmp.gt.f32.partialorder %v1295, 0.5
  %vm1298 = vcmp.gt.f32.partialorder %v1296, 0.5
  %v1299 = vsel %vm1297, 1.0, 0.0
  %v1300 = vsel %vm1298, 1.0, 0.0
  %1303 = vrot.lane.b32.xlu0 %v1299, 48
  %v1304 = vpop.permute.xlu0 %1303
  %1305 = vrot.lane.b32.xlu0 %v1300, 48
  %v1306 = vpop.permute.xlu0 %1305
  %vm1309 = vcmask 523648
  %1310 = vst.msk [vmem:[#allocation3] sm:$0xff] %vm1309, %v1304
  %1311 = vst.msk [vmem:[#allocation3 + $0x8] sm:$0xff] %vm1309, %v1306
  %v1312 = vmul.f32 %v1295, 0.2
  %v1313 = vmul.f32 %v1296, 0.2
  %v1314 = vsub.f32 1.0, %v1299
  %v1315 = vsub.f32 1.0, %v1300
  %v1316 = vmul.f32 %v1312, %v1314
  %v1317 = vmul.f32 %v1313, %v1315
  %1318 = vrot.lane.b32.xlu0 %v1213, 64
  %v1319 = vpop.permute.xlu0 %1318
  %1320 = vrot.lane.b32.xlu0 %v1214, 64
  %v1321 = vpop.permute.xlu0 %1320
  %v1324 = vadd.f32 %v1316, %v1319
  %v1325 = vadd.f32 %v1317, %v1321
  %vm1326 = vcmp.gt.f32.partialorder %v1324, 0.5
  %vm1327 = vcmp.gt.f32.partialorder %v1325, 0.5
  %v1328 = vsel %vm1326, 1.0, 0.0
  %v1329 = vsel %vm1327, 1.0, 0.0
  %1332 = vrot.lane.b32.xlu0 %v1328, 64
  %v1333 = vpop.permute.xlu0 %1332
  %1334 = vrot.lane.b32.xlu0 %v1329, 64
  %v1335 = vpop.permute.xlu0 %1334
  %vm1338 = vcmask 654848
  %1339 = vst.msk [vmem:[#allocation3] sm:$0xff] %vm1338, %v1333
  %1340 = vst.msk [vmem:[#allocation3 + $0x8] sm:$0xff] %vm1338, %v1335
  %v1341 = vmul.f32 %v1324, 0.2
  %v1342 = vmul.f32 %v1325, 0.2
  %v1343 = vsub.f32 1.0, %v1328
  %v1344 = vsub.f32 1.0, %v1329
  %v1345 = vmul.f32 %v1341, %v1343
  %v1346 = vmul.f32 %v1342, %v1344
  %1347 = vrot.lane.b32.xlu0 %v1213, 48
  %v1348 = vpop.permute.xlu0 %1347
  %1349 = vrot.lane.b32.xlu0 %v1214, 48
  %v1350 = vpop.permute.xlu0 %1349
  %v1353 = vadd.f32 %v1345, %v1348
  %v1354 = vadd.f32 %v1346, %v1350
  %vm1355 = vcmp.gt.f32.partialorder %v1353, 0.5
  %vm1356 = vcmp.gt.f32.partialorder %v1354, 0.5
  %v1357 = vsel %vm1355, 1.0, 0.0
  %v1358 = vsel %vm1356, 1.0, 0.0
  %1361 = vrot.lane.b32.xlu0 %v1357, 80
  %v1362 = vpop.permute.xlu0 %1361
  %1363 = vrot.lane.b32.xlu0 %v1358, 80
  %v1364 = vpop.permute.xlu0 %1363
  %vm1367 = vcmask 786048
  %1368 = vst.msk [vmem:[#allocation3] sm:$0xff] %vm1367, %v1362
  %1369 = vst.msk [vmem:[#allocation3 + $0x8] sm:$0xff] %vm1367, %v1364
  %v1370 = vmul.f32 %v1353, 0.2
  %v1371 = vmul.f32 %v1354, 0.2
  %v1372 = vsub.f32 1.0, %v1357
  %v1373 = vsub.f32 1.0, %v1358
  %v1374 = vmul.f32 %v1370, %v1372
  %v1375 = vmul.f32 %v1371, %v1373
  %1376 = vrot.lane.b32.xlu0 %v1213, 32
  %v1377 = vpop.permute.xlu0 %1376
  %1378 = vrot.lane.b32.xlu0 %v1214, 32
  %v1379 = vpop.permute.xlu0 %1378
  %v1382 = vadd.f32 %v1374, %v1377
  %v1383 = vadd.f32 %v1375, %v1379
  %vm1384 = vcmp.gt.f32.partialorder %v1382, 0.5
  %vm1385 = vcmp.gt.f32.partialorder %v1383, 0.5
  %v1386 = vsel %vm1384, 1.0, 0.0
  %v1387 = vsel %vm1385, 1.0, 0.0
  %1390 = vrot.lane.b32.xlu0 %v1386, 96
  %v1391 = vpop.permute.xlu0 %1390
  %1392 = vrot.lane.b32.xlu0 %v1387, 96
  %v1393 = vpop.permute.xlu0 %1392
  %vm1396 = vcmask 917248
  %1397 = vst.msk [vmem:[#allocation3] sm:$0xff] %vm1396, %v1391
  %1398 = vst.msk [vmem:[#allocation3 + $0x8] sm:$0xff] %vm1396, %v1393
  %v1399 = vmul.f32 %v1382, 0.2
  %v1400 = vmul.f32 %v1383, 0.2
  %v1401 = vsub.f32 1.0, %v1386
  %v1402 = vsub.f32 1.0, %v1387
  %v1403 = vmul.f32 %v1399, %v1401
  %v1404 = vmul.f32 %v1400, %v1402
  %1405 = vrot.lane.b32.xlu0 %v1213, 16
  %v1406 = vpop.permute.xlu0 %1405
  %1407 = vrot.lane.b32.xlu0 %v1214, 16
  %v1408 = vpop.permute.xlu0 %1407
  %v1411 = vadd.f32 %v1403, %v1406
  %v1412 = vadd.f32 %v1404, %v1408
  %vm1413 = vcmp.gt.f32.partialorder %v1411, 0.5
  %vm1414 = vcmp.gt.f32.partialorder %v1412, 0.5
  %v1415 = vsel %vm1413, 1.0, 0.0
  %v1416 = vsel %vm1414, 1.0, 0.0
  %1419 = vrot.lane.b32.xlu0 %v1415, 112
  %v1420 = vpop.permute.xlu0 %1419
  %1421 = vrot.lane.b32.xlu0 %v1416, 112
  %v1422 = vpop.permute.xlu0 %1421
  %vm1425 = vcmask 1048448
  %1426 = vst.msk [vmem:[#allocation3] sm:$0xff] %vm1425, %v1420
  %1427 = vst.msk [vmem:[#allocation3 + $0x8] sm:$0xff] %vm1425, %v1422
  %v1428 = vld [vmem:[#allocation3] sm:$0xff]
  %v1429 = vld [vmem:[#allocation3 + $0x8] sm:$0xff]
  %v1430 = vpack.c.bf16 %v1429, %v1428
  %v1431 = vld [vmem:[%s1] sm:$0xf]
  %v1432 = vld [vmem:[%s1 + $0x4] sm:$0xf]
  %v1433 = vld [vmem:[%s1 + $0x8] sm:$0xf]
  %v1434 = vld [vmem:[%s1 + $0xc] sm:$0xf]
  %v1435 = vld [vmem:[%s1 + $0x10] sm:$0xf]
  %v1436 = vld [vmem:[%s1 + $0x14] sm:$0xf]
  %v1443 = vunpack.c.l.b16 %v1431
  %v1444 = vunpack.c.l.b16 %v1432
  %v1445 = vunpack.c.l.b16 %v1433
  %v1446 = vunpack.c.l.b16 %v1434
  %v1447 = vunpack.c.l.b16 %v1435
  %v1448 = vunpack.c.l.b16 %v1436
  %v1449 = vpack.c.b16 %v1444, %v1443
  %v1450 = vpack.c.b16 %v1446, %v1445
  %v1451 = vpack.c.b16 %v1448, %v1447
  %v1453 = vsel %vm646, %v1449, 0
  %v1456 = vsel %vm646, %v1450, 0
  %v1459 = vsel %vm646, %v1451, 0
  %1461 = vmatprep.subr.bf16.mxu0 0
  %1462 = vmatpush1.bf16.msra.mxu0 0
  %1463 = vmatprep.subr.bf16.mxu0 0
  %1464 = vmatpush1.bf16.msra.mxu0 0
  %1465 = vmatprep.subr.bf16.mxu0 0
  %1466 = vmatpush1.bf16.msra.mxu0 0
  %1467 = vmatprep.subr.bf16.mxu0 0
  %1468 = vmatpush1.bf16.msra.mxu0 0
  %1469 = vmatprep.subr.bf16.mxu0 0
  %1470 = vmatpush1.bf16.msra.mxu0 0
  %1471 = vmatprep.subr.bf16.mxu0 0
  %1472 = vmatpush1.bf16.msra.mxu0 0
  %1473 = vmatprep.subr.bf16.mxu0 0
  %1474 = vmatpush1.bf16.msra.mxu0 0
  %1475 = vmatprep.subr.bf16.mxu0 0
  %1476 = vmatpush1.bf16.msra.mxu0 %v1430
  %1477 = vmatprep.subr.bf16.mxu0 0
  %1478 = vmatpush2.bf16.msra.mxu0 0
  %1479 = vmatprep.subr.bf16.mxu0 0
  %1480 = vmatpush2.bf16.msra.mxu0 0
  %1481 = vmatprep.subr.bf16.mxu0 0
  %1482 = vmatpush2.bf16.msra.mxu0 0
  %1483 = vmatprep.subr.bf16.mxu0 0
  %1484 = vmatpush2.bf16.msra.mxu0 0
  %1485 = vmatprep.subr.bf16.mxu0 0
  %1486 = vmatpush2.bf16.msra.mxu0 0
  %1487 = vmatprep.subr.bf16.mxu0 0
  %1488 = vmatpush2.bf16.msra.mxu0 0
  %1489 = vmatprep.subr.bf16.mxu0 0
  %1490 = vmatpush2.bf16.msra.mxu0 0
  %1491 = vmatprep.subr.bf16.mxu0 0
  %1492 = vmatpush2.bf16.msra.mxu0 0
  %1493 = vmatprep.mubr.bf16.mxu0 0
  %1494 = vmatmul.mubr.bf16.gmra.mxu0 %v1453
  %v1495 = vpop.f32.mrf.mxu0
  %v1496 = vadd.f32 0.0, %v1495
  %v1497 = vpop.f32.mrf.mxu0
  %v1498 = vpop.f32.mrf.mxu0
  %v1499 = vadd.f32 0.0, %v1498
  %v1500 = vpop.f32.mrf.mxu0
  %1501 = vmatprep.mubr.bf16.mxu0 0
  %1502 = vmatmul.mubr.bf16.gmra.mxu0 %v1456
  %v1503 = vpop.f32.mrf.mxu0
  %v1504 = vadd.f32 0.0, %v1503
  %v1505 = vpop.f32.mrf.mxu0
  %v1506 = vpop.f32.mrf.mxu0
  %v1507 = vadd.f32 0.0, %v1506
  %v1508 = vpop.f32.mrf.mxu0
  %1509 = vmatprep.mubr.bf16.mxu0 0
  %1510 = vmatmul.mubr.bf16.gmra.mxu0 %v1459
  %v1511 = vpop.f32.mrf.mxu0
  %v1512 = vadd.f32 0.0, %v1511
  %v1513 = vpop.f32.mrf.mxu0
  %v1514 = vpop.f32.mrf.mxu0
  %v1515 = vadd.f32 0.0, %v1514
  %v1516 = vpop.f32.mrf.mxu0
  %1517 = vdwg.mxu0
  %v1518 = vpack.c.bf16 %v1499, %v1496
  %v1519 = vpack.c.bf16 %v1507, %v1504
  %v1520 = vpack.c.bf16 %v1515, %v1512
  %v1521 = vld [vmem:[%s10] sm:$0xf]
  %v1522 = vld [vmem:[%s10 + $0x4] sm:$0xf]
  %v1523 = vld [vmem:[%s10 + $0x8] sm:$0xf]
  %v1524 = vld [vmem:[%s10 + $0xc] sm:$0xf]
  %v1525 = vld [vmem:[%s10 + $0x10] sm:$0xf]
  %v1526 = vld [vmem:[%s10 + $0x14] sm:$0xf]
  %v1527 = vld [vmem:[%s10 + $0x18] sm:$0xf]
  %v1528 = vld [vmem:[%s10 + $0x1c] sm:$0xf]
  %v1529 = vld [vmem:[%s10 + $0x20] sm:$0xf]
  %v1530 = vld [vmem:[%s10 + $0x24] sm:$0xf]
  %v1531 = vld [vmem:[%s10 + $0x28] sm:$0xf]
  %v1532 = vld [vmem:[%s10 + $0x2c] sm:$0xf]
  %v1533 = vld [vmem:[%s10 + $0x30] sm:$0xf]
  %v1534 = vld [vmem:[%s10 + $0x34] sm:$0xf]
  %v1535 = vld [vmem:[%s10 + $0x38] sm:$0xf]
  %v1536 = vld [vmem:[%s10 + $0x3c] sm:$0xf]
  %v1537 = vld [vmem:[%s10 + $0x40] sm:$0xf]
  %v1538 = vld [vmem:[%s10 + $0x44] sm:$0xf]
  %v1539 = vld [vmem:[%s10 + $0x48] sm:$0xf]
  %v1540 = vld [vmem:[%s10 + $0x4c] sm:$0xf]
  %v1541 = vld [vmem:[%s10 + $0x50] sm:$0xf]
  %v1542 = vld [vmem:[%s10 + $0x54] sm:$0xf]
  %v1543 = vld [vmem:[%s10 + $0x58] sm:$0xf]
  %v1544 = vld [vmem:[%s10 + $0x5c] sm:$0xf]
  %v1545 = vld [vmem:[%s10 + $0x60] sm:$0xf]
  %v1546 = vld [vmem:[%s10 + $0x64] sm:$0xf]
  %v1547 = vld [vmem:[%s10 + $0x68] sm:$0xf]
  %v1548 = vld [vmem:[%s10 + $0x6c] sm:$0xf]
  %v1549 = vld [vmem:[%s10 + $0x70] sm:$0xf]
  %v1550 = vld [vmem:[%s10 + $0x74] sm:$0xf]
  %v1551 = vld [vmem:[%s10 + $0x78] sm:$0xf]
  %v1552 = vld [vmem:[%s10 + $0x7c] sm:$0xf]
  %v1569 = vunpack.c.l.b16 %v1537
  %v1570 = vunpack.c.l.b16 %v1538
  %v1571 = vunpack.c.l.b16 %v1539
  %v1572 = vunpack.c.l.b16 %v1540
  %v1573 = vunpack.c.l.b16 %v1541
  %v1574 = vunpack.c.l.b16 %v1542
  %v1575 = vunpack.c.l.b16 %v1543
  %v1576 = vunpack.c.l.b16 %v1544
  %v1577 = vunpack.c.l.b16 %v1545
  %v1578 = vunpack.c.l.b16 %v1546
  %v1579 = vunpack.c.l.b16 %v1547
  %v1580 = vunpack.c.l.b16 %v1548
  %v1581 = vunpack.c.l.b16 %v1549
  %v1582 = vunpack.c.l.b16 %v1550
  %v1583 = vunpack.c.l.b16 %v1551
  %v1584 = vunpack.c.l.b16 %v1552
  %v1585 = vpack.c.b16 %v1570, %v1569
  %v1586 = vpack.c.b16 %v1572, %v1571
  %v1587 = vpack.c.b16 %v1574, %v1573
  %v1588 = vpack.c.b16 %v1576, %v1575
  %v1589 = vpack.c.b16 %v1578, %v1577
  %v1590 = vpack.c.b16 %v1580, %v1579
  %v1591 = vpack.c.b16 %v1582, %v1581
  %v1592 = vpack.c.b16 %v1584, %v1583
  %1601 = vmatprep.subr.bf16.mxu0 0
  %1602 = vmatpush1.bf16.msra.mxu0 %v1592
  %1603 = vmatprep.subr.bf16.mxu0 0
  %1604 = vmatpush1.bf16.msra.mxu0 %v1591
  %1605 = vmatprep.subr.bf16.mxu0 0
  %1606 = vmatpush1.bf16.msra.mxu0 %v1590
  %1607 = vmatprep.subr.bf16.mxu0 0
  %1608 = vmatpush1.bf16.msra.mxu0 %v1589
  %1609 = vmatprep.subr.bf16.mxu0 0
  %1610 = vmatpush1.bf16.msra.mxu0 %v1588
  %1611 = vmatprep.subr.bf16.mxu0 0
  %1612 = vmatpush1.bf16.msra.mxu0 %v1587
  %1613 = vmatprep.subr.bf16.mxu0 0
  %1614 = vmatpush1.bf16.msra.mxu0 %v1586
  %1615 = vmatprep.subr.bf16.mxu0 0
  %1616 = vmatpush1.bf16.msra.mxu0 %v1585
  %1617 = vmatprep.subr.bf16.mxu0 0
  %1618 = vmatpush2.bf16.msra.mxu0 0
  %1619 = vmatprep.subr.bf16.mxu0 0
  %1620 = vmatpush2.bf16.msra.mxu0 0
  %1621 = vmatprep.subr.bf16.mxu0 0
  %1622 = vmatpush2.bf16.msra.mxu0 0
  %1623 = vmatprep.subr.bf16.mxu0 0
  %1624 = vmatpush2.bf16.msra.mxu0 0
  %1625 = vmatprep.subr.bf16.mxu0 0
  %1626 = vmatpush2.bf16.msra.mxu0 0
  %1627 = vmatprep.subr.bf16.mxu0 0
  %1628 = vmatpush2.bf16.msra.mxu0 0
  %1629 = vmatprep.subr.bf16.mxu0 0
  %1630 = vmatpush2.bf16.msra.mxu0 0
  %1631 = vmatprep.subr.bf16.mxu0 0
  %1632 = vmatpush2.bf16.msra.mxu0 0
  %1633 = vmatprep.mubr.bf16.mxu0 0
  %1634 = vmatmul.mubr.bf16.gmra.mxu0 %v1518
  %v1635 = vpop.f32.mrf.mxu0
  %v1636 = vadd.f32 0.0, %v1635
  %v1637 = vpop.f32.mrf.mxu0
  %v1638 = vpop.f32.mrf.mxu0
  %v1639 = vadd.f32 0.0, %v1638
  %v1640 = vpop.f32.mrf.mxu0
  %1641 = vdwg.mxu0
  %v1658 = vunpack.c.l.b16 %v1521
  %v1659 = vunpack.c.l.b16 %v1522
  %v1660 = vunpack.c.l.b16 %v1523
  %v1661 = vunpack.c.l.b16 %v1524
  %v1662 = vunpack.c.l.b16 %v1525
  %v1663 = vunpack.c.l.b16 %v1526
  %v1664 = vunpack.c.l.b16 %v1527
  %v1665 = vunpack.c.l.b16 %v1528
  %v1666 = vunpack.c.l.b16 %v1529
  %v1667 = vunpack.c.l.b16 %v1530
  %v1668 = vunpack.c.l.b16 %v1531
  %v1669 = vunpack.c.l.b16 %v1532
  %v1670 = vunpack.c.l.b16 %v1533
  %v1671 = vunpack.c.l.b16 %v1534
  %v1672 = vunpack.c.l.b16 %v1535
  %v1673 = vunpack.c.l.b16 %v1536
  %v1674 = vpack.c.b16 %v1659, %v1658
  %v1675 = vpack.c.b16 %v1661, %v1660
  %v1676 = vpack.c.b16 %v1663, %v1662
  %v1677 = vpack.c.b16 %v1665, %v1664
  %v1678 = vpack.c.b16 %v1667, %v1666
  %v1679 = vpack.c.b16 %v1669, %v1668
  %v1680 = vpack.c.b16 %v1671, %v1670
  %v1681 = vpack.c.b16 %v1673, %v1672
  %1690 = vmatprep.subr.bf16.mxu0 0
  %1691 = vmatpush1.bf16.msra.mxu0 %v1681
  %1692 = vmatprep.subr.bf16.mxu0 0
  %1693 = vmatpush1.bf16.msra.mxu0 %v1680
  %1694 = vmatprep.subr.bf16.mxu0 0
  %1695 = vmatpush1.bf16.msra.mxu0 %v1679
  %1696 = vmatprep.subr.bf16.mxu0 0
  %1697 = vmatpush1.bf16.msra.mxu0 %v1678
  %1698 = vmatprep.subr.bf16.mxu0 0
  %1699 = vmatpush1.bf16.msra.mxu0 %v1677
  %1700 = vmatprep.subr.bf16.mxu0 0
  %1701 = vmatpush1.bf16.msra.mxu0 %v1676
  %1702 = vmatprep.subr.bf16.mxu0 0
  %1703 = vmatpush1.bf16.msra.mxu0 %v1675
  %1704 = vmatprep.subr.bf16.mxu0 0
  %1705 = vmatpush1.bf16.msra.mxu0 %v1674
  %1706 = vmatprep.subr.bf16.mxu0 0
  %1707 = vmatpush2.bf16.msra.mxu0 0
  %1708 = vmatprep.subr.bf16.mxu0 0
  %1709 = vmatpush2.bf16.msra.mxu0 0
  %1710 = vmatprep.subr.bf16.mxu0 0
  %1711 = vmatpush2.bf16.msra.mxu0 0
  %1712 = vmatprep.subr.bf16.mxu0 0
  %1713 = vmatpush2.bf16.msra.mxu0 0
  %1714 = vmatprep.subr.bf16.mxu0 0
  %1715 = vmatpush2.bf16.msra.mxu0 0
  %1716 = vmatprep.subr.bf16.mxu0 0
  %1717 = vmatpush2.bf16.msra.mxu0 0
  %1718 = vmatprep.subr.bf16.mxu0 0
  %1719 = vmatpush2.bf16.msra.mxu0 0
  %1720 = vmatprep.subr.bf16.mxu0 0
  %1721 = vmatpush2.bf16.msra.mxu0 0
  %1722 = vmatprep.mubr.bf16.mxu0 0
  %1723 = vmatmul.mubr.bf16.gmra.mxu0 %v1430
  %v1724 = vpop.f32.mrf.mxu0
  %v1725 = vadd.f32 %v1636, %v1724
  %v1726 = vpop.f32.mrf.mxu0
  %v1727 = vpop.f32.mrf.mxu0
  %v1728 = vadd.f32 %v1639, %v1727
  %v1729 = vpop.f32.mrf.mxu0
  %1730 = vdwg.mxu0
  %v1731 = vld [vmem:[%s10 + $0x80] sm:$0xf]
  %v1732 = vld [vmem:[%s10 + $0x84] sm:$0xf]
  %v1733 = vld [vmem:[%s10 + $0x88] sm:$0xf]
  %v1734 = vld [vmem:[%s10 + $0x8c] sm:$0xf]
  %v1735 = vld [vmem:[%s10 + $0x90] sm:$0xf]
  %v1736 = vld [vmem:[%s10 + $0x94] sm:$0xf]
  %v1737 = vld [vmem:[%s10 + $0x98] sm:$0xf]
  %v1738 = vld [vmem:[%s10 + $0x9c] sm:$0xf]
  %v1739 = vld [vmem:[%s10 + $0xa0] sm:$0xf]
  %v1740 = vld [vmem:[%s10 + $0xa4] sm:$0xf]
  %v1741 = vld [vmem:[%s10 + $0xa8] sm:$0xf]
  %v1742 = vld [vmem:[%s10 + $0xac] sm:$0xf]
  %v1743 = vld [vmem:[%s10 + $0xb0] sm:$0xf]
  %v1744 = vld [vmem:[%s10 + $0xb4] sm:$0xf]
  %v1745 = vld [vmem:[%s10 + $0xb8] sm:$0xf]
  %v1746 = vld [vmem:[%s10 + $0xbc] sm:$0xf]
  %v1763 = vunpack.c.l.b16 %v1731
  %v1764 = vunpack.c.l.b16 %v1732
  %v1765 = vunpack.c.l.b16 %v1733
  %v1766 = vunpack.c.l.b16 %v1734
  %v1767 = vunpack.c.l.b16 %v1735
  %v1768 = vunpack.c.l.b16 %v1736
  %v1769 = vunpack.c.l.b16 %v1737
  %v1770 = vunpack.c.l.b16 %v1738
  %v1771 = vunpack.c.l.b16 %v1739
  %v1772 = vunpack.c.l.b16 %v1740
  %v1773 = vunpack.c.l.b16 %v1741
  %v1774 = vunpack.c.l.b16 %v1742
  %v1775 = vunpack.c.l.b16 %v1743
  %v1776 = vunpack.c.l.b16 %v1744
  %v1777 = vunpack.c.l.b16 %v1745
  %v1778 = vunpack.c.l.b16 %v1746
  %v1779 = vpack.c.b16 %v1764, %v1763
  %v1780 = vpack.c.b16 %v1766, %v1765
  %v1781 = vpack.c.b16 %v1768, %v1767
  %v1782 = vpack.c.b16 %v1770, %v1769
  %v1783 = vpack.c.b16 %v1772, %v1771
  %v1784 = vpack.c.b16 %v1774, %v1773
  %v1785 = vpack.c.b16 %v1776, %v1775
  %v1786 = vpack.c.b16 %v1778, %v1777
  %1795 = vmatprep.subr.bf16.mxu0 0
  %1796 = vmatpush1.bf16.msra.mxu0 %v1786
  %1797 = vmatprep.subr.bf16.mxu0 0
  %1798 = vmatpush1.bf16.msra.mxu0 %v1785
  %1799 = vmatprep.subr.bf16.mxu0 0
  %1800 = vmatpush1.bf16.msra.mxu0 %v1784
  %1801 = vmatprep.subr.bf16.mxu0 0
  %1802 = vmatpush1.bf16.msra.mxu0 %v1783
  %1803 = vmatprep.subr.bf16.mxu0 0
  %1804 = vmatpush1.bf16.msra.mxu0 %v1782
  %1805 = vmatprep.subr.bf16.mxu0 0
  %1806 = vmatpush1.bf16.msra.mxu0 %v1781
  %1807 = vmatprep.subr.bf16.mxu0 0
  %1808 = vmatpush1.bf16.msra.mxu0 %v1780
  %1809 = vmatprep.subr.bf16.mxu0 0
  %1810 = vmatpush1.bf16.msra.mxu0 %v1779
  %1811 = vmatprep.subr.bf16.mxu0 0
  %1812 = vmatpush2.bf16.msra.mxu0 0
  %1813 = vmatprep.subr.bf16.mxu0 0
  %1814 = vmatpush2.bf16.msra.mxu0 0
  %1815 = vmatprep.subr.bf16.mxu0 0
  %1816 = vmatpush2.bf16.msra.mxu0 0
  %1817 = vmatprep.subr.bf16.mxu0 0
  %1818 = vmatpush2.bf16.msra.mxu0 0
  %1819 = vmatprep.subr.bf16.mxu0 0
  %1820 = vmatpush2.bf16.msra.mxu0 0
  %1821 = vmatprep.subr.bf16.mxu0 0
  %1822 = vmatpush2.bf16.msra.mxu0 0
  %1823 = vmatprep.subr.bf16.mxu0 0
  %1824 = vmatpush2.bf16.msra.mxu0 0
  %1825 = vmatprep.subr.bf16.mxu0 0
  %1826 = vmatpush2.bf16.msra.mxu0 0
  %1827 = vmatprep.mubr.bf16.mxu0 0
  %1828 = vmatmul.mubr.bf16.gmra.mxu0 %v1519
  %v1829 = vpop.f32.mrf.mxu0
  %v1830 = vadd.f32 0.0, %v1829
  %v1831 = vpop.f32.mrf.mxu0
  %v1832 = vpop.f32.mrf.mxu0
  %v1833 = vadd.f32 0.0, %v1832
  %v1834 = vpop.f32.mrf.mxu0
  %1835 = vdwg.mxu0
  %v1836 = vadd.f32 %v1725, %v1830
  %v1837 = vadd.f32 %v1728, %v1833
  %v1838 = vld [vmem:[%s10 + $0xc0] sm:$0xf]
  %v1839 = vld [vmem:[%s10 + $0xc4] sm:$0xf]
  %v1840 = vld [vmem:[%s10 + $0xc8] sm:$0xf]
  %v1841 = vld [vmem:[%s10 + $0xcc] sm:$0xf]
  %v1842 = vld [vmem:[%s10 + $0xd0] sm:$0xf]
  %v1843 = vld [vmem:[%s10 + $0xd4] sm:$0xf]
  %v1844 = vld [vmem:[%s10 + $0xd8] sm:$0xf]
  %v1845 = vld [vmem:[%s10 + $0xdc] sm:$0xf]
  %v1846 = vld [vmem:[%s10 + $0xe0] sm:$0xf]
  %v1847 = vld [vmem:[%s10 + $0xe4] sm:$0xf]
  %v1848 = vld [vmem:[%s10 + $0xe8] sm:$0xf]
  %v1849 = vld [vmem:[%s10 + $0xec] sm:$0xf]
  %v1850 = vld [vmem:[%s10 + $0xf0] sm:$0xf]
  %v1851 = vld [vmem:[%s10 + $0xf4] sm:$0xf]
  %v1852 = vld [vmem:[%s10 + $0xf8] sm:$0xf]
  %v1853 = vld [vmem:[%s10 + $0xfc] sm:$0xf]
  %v1870 = vunpack.c.l.b16 %v1838
  %v1871 = vunpack.c.l.b16 %v1839
  %v1872 = vunpack.c.l.b16 %v1840
  %v1873 = vunpack.c.l.b16 %v1841
  %v1874 = vunpack.c.l.b16 %v1842
  %v1875 = vunpack.c.l.b16 %v1843
  %v1876 = vunpack.c.l.b16 %v1844
  %v1877 = vunpack.c.l.b16 %v1845
  %v1878 = vunpack.c.l.b16 %v1846
  %v1879 = vunpack.c.l.b16 %v1847
  %v1880 = vunpack.c.l.b16 %v1848
  %v1881 = vunpack.c.l.b16 %v1849
  %v1882 = vunpack.c.l.b16 %v1850
  %v1883 = vunpack.c.l.b16 %v1851
  %v1884 = vunpack.c.l.b16 %v1852
  %v1885 = vunpack.c.l.b16 %v1853
  %v1886 = vpack.c.b16 %v1871, %v1870
  %v1887 = vpack.c.b16 %v1873, %v1872
  %v1888 = vpack.c.b16 %v1875, %v1874
  %v1889 = vpack.c.b16 %v1877, %v1876
  %v1890 = vpack.c.b16 %v1879, %v1878
  %v1891 = vpack.c.b16 %v1881, %v1880
  %v1892 = vpack.c.b16 %v1883, %v1882
  %v1893 = vpack.c.b16 %v1885, %v1884
  %1902 = vmatprep.subr.bf16.mxu0 0
  %1903 = vmatpush1.bf16.msra.mxu0 %v1893
  %1904 = vmatprep.subr.bf16.mxu0 0
  %1905 = vmatpush1.bf16.msra.mxu0 %v1892
  %1906 = vmatprep.subr.bf16.mxu0 0
  %1907 = vmatpush1.bf16.msra.mxu0 %v1891
  %1908 = vmatprep.subr.bf16.mxu0 0
  %1909 = vmatpush1.bf16.msra.mxu0 %v1890
  %1910 = vmatprep.subr.bf16.mxu0 0
  %1911 = vmatpush1.bf16.msra.mxu0 %v1889
  %1912 = vmatprep.subr.bf16.mxu0 0
  %1913 = vmatpush1.bf16.msra.mxu0 %v1888
  %1914 = vmatprep.subr.bf16.mxu0 0
  %1915 = vmatpush1.bf16.msra.mxu0 %v1887
  %1916 = vmatprep.subr.bf16.mxu0 0
  %1917 = vmatpush1.bf16.msra.mxu0 %v1886
  %1918 = vmatprep.subr.bf16.mxu0 0
  %1919 = vmatpush2.bf16.msra.mxu0 0
  %1920 = vmatprep.subr.bf16.mxu0 0
  %1921 = vmatpush2.bf16.msra.mxu0 0
  %1922 = vmatprep.subr.bf16.mxu0 0
  %1923 = vmatpush2.bf16.msra.mxu0 0
  %1924 = vmatprep.subr.bf16.mxu0 0
  %1925 = vmatpush2.bf16.msra.mxu0 0
  %1926 = vmatprep.subr.bf16.mxu0 0
  %1927 = vmatpush2.bf16.msra.mxu0 0
  %1928 = vmatprep.subr.bf16.mxu0 0
  %1929 = vmatpush2.bf16.msra.mxu0 0
  %1930 = vmatprep.subr.bf16.mxu0 0
  %1931 = vmatpush2.bf16.msra.mxu0 0
  %1932 = vmatprep.subr.bf16.mxu0 0
  %1933 = vmatpush2.bf16.msra.mxu0 0
  %1934 = vmatprep.mubr.bf16.mxu0 0
  %1935 = vmatmul.mubr.bf16.gmra.mxu0 %v1520
  %v1936 = vpop.f32.mrf.mxu0
  %v1937 = vadd.f32 0.0, %v1936
  %v1938 = vpop.f32.mrf.mxu0
  %v1939 = vpop.f32.mrf.mxu0
  %v1940 = vadd.f32 0.0, %v1939
  %v1941 = vpop.f32.mrf.mxu0
  %1942 = vdwg.mxu0
  %v1943 = vadd.f32 %v1836, %v1937
  %v1944 = vadd.f32 %v1837, %v1940
  %v1945 = vld [vmem:[%s11] sm:$0x1]
  %v1947 = vlaneseq
  %v1948 = vshrl.u32 %v1947, 7
  %v1949 = vsub.s32 0, %v1948
  %v1950 = vrot.slane %v1945, %v1949
  %v1952 = vadd.f32 %v1943, %v1950
  %v1953 = vadd.f32 %v1944, %v1950
  %1954 = vst.msk [vmem:[%s14] sm:$0xff] %vm61, %v1952
  %1955 = vst.msk [vmem:[%s14 + $0x8] sm:$0xff] %vm61, %v1953
  // Predicated region
  $region58: #{deep_layer_forward.1} parent=0 // pred_check
    _
  $region59: #{deep_layer_forward.1} parent=0 // pred_check_branch
    %1957 = sbr.rel (0) target = $region61
  $region60: #{deep_layer_forward.1} parent=0 // pred_region
    _
  $region61: #{deep_layer_forward.1} parent=0 // pred_fallthru
    _
  // Predicated region
  $region62: #{deep_layer_forward.1} parent=0 // pred_check
    _
  $region63: #{deep_layer_forward.1} parent=0 // pred_check_branch
    %1959 = sbr.rel (0) target = $region65
  $region64: #{deep_layer_forward.1} parent=0 // pred_region
    _
  $region65: #{deep_layer_forward.1} parent=0 // pred_fallthru
    _

</llo_original>
